<compile_context>
chip_gen: v5e
topology: v5e:2x2
jax: 0.10.0
libtpu: 0.0.40
codegen_flags: <defaults>
</compile_context>

<pallas_src>
import functools

import jax
import jax.numpy as jnp
from jax.experimental import pallas as pl
from jax.experimental.pallas import tpu as pltpu


def _round_up(x, m):
    return (x + m - 1) // m * m


def _device_kind():
    try:
        return jax.devices()[0].device_kind.lower()
    except Exception:
        return ""


def _mxu_lane_multiple():
    # v5e: 4x(128x128) MXU; v6e/v7x: 2x(256x256) -> pad feature axes to the
    # full MXU width of the chip generation.
    return 128 if "v5" in _device_kind() else 256


def _compute_dtype():
    # v5-class chips have no bf16 VPU/EUP path; keep bias+GELU in f32 there.
    return jnp.float32 if "v5" in _device_kind() else jnp.bfloat16


def _vmem_limit_bytes():
    kind = _device_kind()
    if "v5" in kind or "v6" in kind:
        return 64 * 1024 * 1024        # 128 MiB physical VMEM
    return 48 * 1024 * 1024            # v7x/unknown: 64 MiB physical -> headroom


def _target_rows_per_step():
    kind = _device_kind()
    if "v5" in kind or "v6" in kind:
        return 768                     # 512-1024 rows ~ HBM-roofline sweet spot
    return 256                         # v7x: smaller tiles for 64 MiB VMEM


def choose_imgs_per_step(batch, n_patches, *, target_rows):
    """Whole images per grid step.

    Prefers >= 2 grid steps (so ("parallel",) can shard across v7x's two
    TensorCores) with imgs_per_step % 8 == 0 (sublane alignment of the output
    block); falls back to the whole batch when it cannot be split legally."""
    best = None
    cand = 8
    while cand * 2 <= batch:
        if batch % cand == 0:
            rows = cand * n_patches
            score = abs(rows - target_rows)
            if best is None or score < best[0]:
                best = (score, cand)
        cand += 8
    return best[1] if best is not None else batch


# ----------------------------------------------------------------------------
# Pallas kernel: patch-embed matmul + GELU + matmul-pool + classifier matmul
# ----------------------------------------------------------------------------
def _classifier_fwd_kernel(patches_ref, w_emb_ref, b_emb_ref, pool_ref,
                           w_cls_ref, b_cls_ref, out_ref, *,
                           inv_n_patches, compute_dtype):
    # patches_ref : (row_tile, Dp)          bf16 flattened patches (streamed)
    # w_emb_ref   : (Dp, Hp)                bf16 patch-embed weight (resident)
    # b_emb_ref   : (1, Hp)                 f32 patch-embed bias   (resident)
    # pool_ref    : (imgs_t, row_tile)      bf16 0/1 pooling block (resident)
    # w_cls_ref   : (Hp, OUTP)              bf16 classifier weight (resident)
    # b_cls_ref   : (1, OUTP)               f32 classifier bias    (resident)
    # out_ref     : (imgs_t, OUTP)          f32 logits, lane-dense (only [:, :2] valid)

    # Patch embedding: bf16 MXU operands, f32 accumulation.
    feats = jnp.dot(patches_ref[...], w_emb_ref[...],
                    preferred_element_type=jnp.float32)            # (row_tile, Hp)

    # Bias + GELU: bf16 on v6e/v7x (bf16 VPU/EUP, halves the intermediate),
    # f32 on v5-class chips.
    feats = feats.astype(compute_dtype)
    feats = jax.nn.gelu(feats + b_emb_ref[...].astype(compute_dtype),
                        approximate=True)

    # Mean pool over patches as an MXU matmul against the 0/1 block, then an
    # exact f32 * 1/P scale (VPU slot has slack next to MXU work).
    pooled = jnp.dot(pool_ref[...], feats.astype(jnp.bfloat16),
                     preferred_element_type=jnp.float32)           # (imgs_t, Hp)
    pooled = pooled * inv_n_patches

    # Classifier head; output stays lane-dense (padded columns are zero).
    logits = jnp.dot(pooled.astype(jnp.bfloat16), w_cls_ref[...],
                     preferred_element_type=jnp.float32) + b_cls_ref[...]
    out_ref[...] = logits.astype(out_ref.dtype)


def classifier_forward(patches, w_emb, b_emb, pool_block, w_cls, b_cls, *,
                       batch, n_patches, imgs_per_step,
                       compute_dtype=jnp.bfloat16,
                       single_buffer_residents=True,
                       vmem_limit_bytes=48 * 1024 * 1024):
    rows, dp = patches.shape
    hp = w_emb.shape[1]
    outp = w_cls.shape[1]

    assert rows == batch * n_patches
    assert batch % imgs_per_step == 0
    if imgs_per_step != batch:
        # (8,128) lowering rule: the output block's second-to-last dim must be a
        # multiple of 8 once it is no longer the full batch dim.
        assert imgs_per_step % 8 == 0, "imgs_per_step must be a multiple of 8"
    row_tile = imgs_per_step * n_patches
    n_tiles = batch // imgs_per_step
    assert pool_block.shape == (imgs_per_step, row_tile)

    if single_buffer_residents:
        # Constant-index operands stay VMEM-resident; a single buffer halves
        # their footprint vs. default double-buffering (matters most on v7x).
        resident_kwargs = dict(pipeline_mode=pl.Buffered(1))
    else:
        resident_kwargs = {}

    def resident(shape):
        return pl.BlockSpec(shape, lambda i: (0, 0), **resident_kwargs)

    kernel = functools.partial(_classifier_fwd_kernel,
                               inv_n_patches=1.0 / n_patches,
                               compute_dtype=compute_dtype)

    cost = pl.CostEstimate(
        flops=(2 * rows * dp * hp              # patch-embed matmul
               + 2 * batch * row_tile * hp     # pool matmul
               + 2 * batch * hp * outp),       # classifier matmul
        transcendentals=rows * hp,             # GELU tanh
        bytes_accessed=(patches.size * patches.dtype.itemsize
                        + w_emb.size * w_emb.dtype.itemsize
                        + b_emb.size * b_emb.dtype.itemsize
                        + pool_block.size * pool_block.dtype.itemsize
                        + w_cls.size * w_cls.dtype.itemsize
                        + b_cls.size * b_cls.dtype.itemsize
                        + batch * outp * 4))

    grid_spec = pltpu.PrefetchScalarGridSpec(
        num_scalar_prefetch=0,
        grid=(n_tiles,),
        in_specs=[
            pl.BlockSpec((row_tile, dp), lambda i: (i, 0)),   # streamed patches
            resident((dp, hp)),                               # patch-embed W
            resident((1, hp)),                                # patch-embed b
            resident((imgs_per_step, row_tile)),              # one pool block
            resident((hp, outp)),                             # classifier W
            resident((1, outp)),                              # classifier b
        ],
        out_specs=pl.BlockSpec((imgs_per_step, outp), lambda i: (i, 0)),
    )

    return pl.pallas_call(
        kernel,
        out_shape=jax.ShapeDtypeStruct((batch, outp), jnp.float32),
        grid_spec=grid_spec,
        cost_estimate=cost,
        compiler_params=pltpu.CompilerParams(
            # Row-tile steps are fully independent (each writes its own output
            # rows) -> "parallel" shards them across v7x's 2 TensorCores.
            dimension_semantics=("parallel",),
            vmem_limit_bytes=vmem_limit_bytes,
            # Allow XLA to fuse the patch transpose/cast chain into the patches
            # operand when this call sits inside a larger jit.
            allow_input_fusion=[True, False, False, False, False, False]),
    )(patches, w_emb, b_emb, pool_block, w_cls, b_cls)


# ----------------------------------------------------------------------------
# Glue: patch extraction (NCHW -> (B*P, C*p*p)) and parameter construction
# ----------------------------------------------------------------------------
def extract_patches(x, patch):
    # x: (B, C, H, W) NCHW, like the PyTorch module expects.
    b, c, h, w = x.shape
    x = x.reshape(b, c, h // patch, patch, w // patch, patch)
    x = x.transpose(0, 2, 4, 1, 3, 5)                 # (B, Hp, Wp, C, p, p)
    return x.reshape(b * (h // patch) * (w // patch), c * patch * patch)


def build_classifier_head(key, hidden, pretrained_classes=1000):
    """Reproduce the __init__ weight surgery: bicycle/background head from a
    deterministic synthetic 'pretrained' 1000-class classifier."""
    kw, kb = jax.random.split(key)
    w_orig = jax.random.normal(kw, (pretrained_classes, hidden), jnp.float32) * 0.02
    b_orig = jax.random.normal(kb, (pretrained_classes,), jnp.float32) * 0.02

    bicycle_w = w_orig[jnp.array([671, 444])].mean(axis=0, keepdims=True)    # (1, H)
    exclude = {670, 671, 444}
    bg_idx = jnp.array([i for i in range(pretrained_classes) if i not in exclude])
    background_w = w_orig[bg_idx].mean(axis=0, keepdims=True)                # (1, H)
    w_cls = jnp.concatenate([bicycle_w, background_w], axis=0)               # (2, H)

    bicycle_b = b_orig[jnp.array([671, 444])].mean()[None]
    background_b = b_orig[bg_idx].mean()[None]
    b_cls = jnp.concatenate([bicycle_b, background_b], axis=0)               # (2,)
    return w_cls, b_cls


if __name__ == "__main__":
    key = jax.random.PRNGKey(0)
    k_x, k_emb_w, k_emb_b, k_cls = jax.random.split(key, 4)

    # Small shapes consistent with an image-classifier forward.
    B, C, H, W = 2, 4, 16, 16
    patch = 4
    hidden = 32
    num_labels = 2
    n_patches = (H // patch) * (W // patch)            # 16
    patch_dim = C * patch * patch                      # 64
    rows = B * n_patches                               # 32

    mxu = _mxu_lane_multiple()                         # 128 (v5) / 256 (v6e/v7x)
    hp = _round_up(hidden, mxu)
    outp = _round_up(num_labels, mxu)                  # lane-dense padded logits
    compute_dtype = _compute_dtype()

    x = jax.random.normal(k_x, (B, C, H, W), jnp.float32)   # NCHW input

    # Backbone (patch embedding) params.
    w_emb = jax.random.normal(k_emb_w, (patch_dim, hidden), jnp.float32) * 0.05
    b_emb = jax.random.normal(k_emb_b, (1, hidden), jnp.float32) * 0.01

    # Classifier head params via the module's pretrained-weight surgery.
    w_cls2, b_cls2 = build_classifier_head(k_cls, hidden)    # (2, hidden), (2,)

    # Patch extraction.  TODO(synk): at real image sizes, gather patch rows
    # in-kernel from the NCHW tensor (memory_space=pl.ANY + make_async_copy)
    # instead of this host-side transpose; allow_input_fusion is already set on
    # the patches operand for the jitted-pipeline case.
    patches = extract_patches(x, patch)                      # (rows, patch_dim)
    patches_bf = patches.astype(jnp.bfloat16)                # K axis left unpadded

    # Pad only the small weight matrices on their feature (N) axes.
    w_emb_p = jnp.zeros((patch_dim, hp), jnp.float32).at[:, :hidden].set(w_emb)
    b_emb_p = jnp.zeros((1, hp), jnp.float32).at[:, :hidden].set(b_emb)
    w_cls_p = jnp.zeros((hp, outp), jnp.float32).at[:hidden, :num_labels].set(w_cls2.T)
    b_cls_p = jnp.zeros((1, outp), jnp.float32).at[:, :num_labels].set(b_cls2)

    w_emb_bf = w_emb_p.astype(jnp.bfloat16)
    w_cls_bf = w_cls_p.astype(jnp.bfloat16)

    # Tiling: whole images per grid step; >= 2 steps whenever batch allows.
    imgs_per_step = choose_imgs_per_step(B, n_patches,
                                         target_rows=_target_rows_per_step())
    row_tile = imgs_per_step * n_patches

    # Single resident 0/1 pooling block (identical for every grid step); the
    # exact 1/n_patches mean scale is applied in f32 inside the kernel.
    patch_of_row = jnp.arange(row_tile) // n_patches
    pool_block = (patch_of_row[None, :] ==
                  jnp.arange(imgs_per_step)[:, None]).astype(jnp.bfloat16)

    def run(single_buffer_residents):
        out = classifier_forward(
            patches_bf, w_emb_bf, b_emb_p, pool_block, w_cls_bf, b_cls_p,
            batch=B, n_patches=n_patches, imgs_per_step=imgs_per_step,
            compute_dtype=compute_dtype,
            single_buffer_residents=single_buffer_residents,
            vmem_limit_bytes=_vmem_limit_bytes())
        return jax.block_until_ready(out)

    try:
        logits_pad = run(True)
    except Exception:
        # Fallback for jax versions without BlockSpec pipeline_mode support;
        # residents are then default double-buffered (correctness unchanged).
        logits_pad = run(False)
    logits = logits_pad[:, :num_labels]

    # Reference (a): mirrors the kernel arithmetic (same compute dtypes).
    feats_r = jnp.dot(patches_bf, w_emb_bf, preferred_element_type=jnp.float32)
    feats_r = jax.nn.gelu(feats_r.astype(compute_dtype)
                          + b_emb_p.astype(compute_dtype), approximate=True)
    img_of_row = jnp.arange(rows) // n_patches
    pool_full = (img_of_row[None, :] ==
                 jnp.arange(B)[:, None]).astype(jnp.bfloat16)
    pooled_r = jnp.dot(pool_full, feats_r.astype(jnp.bfloat16),
                       preferred_element_type=jnp.float32) * (1.0 / n_patches)
    logits_r = (jnp.dot(pooled_r.astype(jnp.bfloat16), w_cls_bf,
                        preferred_element_type=jnp.float32)
                + b_cls_p)[:, :num_labels]

    # Reference (b): the original full-f32 module math (looser tolerance: the
    # only semantic change is bf16 MXU operands / bf16 GELU on newer chips).
    feats_f = jax.nn.gelu(patches @ w_emb + b_emb, approximate=True)
    pooled_f = feats_f.reshape(B, n_patches, hidden).mean(axis=1)
    logits_f = pooled_f @ w_cls2.T + b_cls2[None, :]

    assert logits.shape == (B, num_labels)
    assert jnp.allclose(logits, logits_r, atol=2e-3, rtol=2e-2)
    assert jnp.allclose(logits, logits_f, atol=2e-2, rtol=5e-2)

    # TODO(synk): the real HuggingFace backbone (config.model_class) and image
    # processor are opaque/external; a synthetic patch-embed backbone stands in.
    print("KERNEL_OK")
</pallas_src>

<mosaic_0001>
module attributes {stable_mosaic.version = 11 : i64} {
  func.func @_classifier_fwd_kernel(%arg0: i32, %arg1: memref<32x64xbf16, #tpu.memory_space<vmem>>, %arg2: memref<64x256xbf16, #tpu.memory_space<vmem>>, %arg3: memref<1x256xf32, #tpu.memory_space<vmem>>, %arg4: memref<2x32xbf16, #tpu.memory_space<vmem>>, %arg5: memref<256x256xbf16, #tpu.memory_space<vmem>>, %arg6: memref<1x256xf32, #tpu.memory_space<vmem>>, %arg7: memref<2x256xf32, #tpu.memory_space<vmem>>) attributes {dimension_semantics = [#tpu.dimension_semantics<parallel>], iteration_bounds = array<i64: 1>, scalar_prefetch = 0 : i64, scratch_operands = 0 : i64, tpu.core_type = #tpu.core_type<tc>, window_params = [{transform_indices = @transform_0, window_bounds = array<i64: 32, 64>}, {pipeline_mode = #tpu.pipeline_mode<synchronous>, transform_indices = @transform_1, window_bounds = array<i64: 64, 256>}, {pipeline_mode = #tpu.pipeline_mode<synchronous>, transform_indices = @transform_2, window_bounds = array<i64: 1, 256>}, {pipeline_mode = #tpu.pipeline_mode<synchronous>, transform_indices = @transform_3, window_bounds = array<i64: 2, 32>}, {pipeline_mode = #tpu.pipeline_mode<synchronous>, transform_indices = @transform_4, window_bounds = array<i64: 256, 256>}, {pipeline_mode = #tpu.pipeline_mode<synchronous>, transform_indices = @transform_5, window_bounds = array<i64: 1, 256>}, {transform_indices = @transform_6, window_bounds = array<i64: 2, 256>}]} {
    %c0 = arith.constant 0 : index
    %c0_0 = arith.constant 0 : index
    %0 = vector.load %arg1[%c0, %c0_0] : memref<32x64xbf16, #tpu.memory_space<vmem>>, vector<32x64xbf16>
    %c0_1 = arith.constant 0 : index
    %c0_2 = arith.constant 0 : index
    %1 = vector.load %arg2[%c0_1, %c0_2] : memref<64x256xbf16, #tpu.memory_space<vmem>>, vector<64x256xbf16>
    %cst = arith.constant dense<0.000000e+00> : vector<32x256xf32>
    %2 = tpu.matmul %0, %1, %cst {dimension_numbers = #tpu.dot_dimension_numbers<[1], [0], [0], [1], [0, 0, 1, 1], [], []>} : vector<32x64xbf16>, vector<64x256xbf16>, vector<32x256xf32> -> vector<32x256xf32>
    %3 = arith.truncf %2 : vector<32x256xf32> to vector<32x256xbf16>
    %c0_3 = arith.constant 0 : index
    %c0_4 = arith.constant 0 : index
    %4 = vector.load %arg3[%c0_3, %c0_4] : memref<1x256xf32, #tpu.memory_space<vmem>>, vector<1x256xf32>
    %5 = arith.truncf %4 : vector<1x256xf32> to vector<1x256xbf16>
    %6 = vector.broadcast %5 : vector<1x256xbf16> to vector<32x256xbf16>
    %7 = arith.addf %3, %6 : vector<32x256xbf16>
    %8 = arith.mulf %7, %7 : vector<32x256xbf16>
    %9 = arith.mulf %7, %8 : vector<32x256xbf16>
    %cst_5 = arith.constant 4.467770e-02 : bf16
    %10 = vector.broadcast %cst_5 : bf16 to vector<32x256xbf16>
    %11 = arith.mulf %10, %9 : vector<32x256xbf16>
    %12 = arith.addf %7, %11 : vector<32x256xbf16>
    %cst_6 = arith.constant 7.968750e-01 : bf16
    %13 = vector.broadcast %cst_6 : bf16 to vector<32x256xbf16>
    %14 = arith.mulf %13, %12 : vector<32x256xbf16>
    %15 = math.tanh %14 : vector<32x256xbf16>
    %cst_7 = arith.constant 1.000000e+00 : bf16
    %16 = vector.broadcast %cst_7 : bf16 to vector<32x256xbf16>
    %17 = arith.addf %16, %15 : vector<32x256xbf16>
    %cst_8 = arith.constant 5.000000e-01 : bf16
    %18 = vector.broadcast %cst_8 : bf16 to vector<32x256xbf16>
    %19 = arith.mulf %18, %17 : vector<32x256xbf16>
    %20 = arith.mulf %7, %19 : vector<32x256xbf16>
    %c0_9 = arith.constant 0 : index
    %c0_10 = arith.constant 0 : index
    %21 = vector.load %arg4[%c0_9, %c0_10] : memref<2x32xbf16, #tpu.memory_space<vmem>>, vector<2x32xbf16>
    %cst_11 = arith.constant dense<0.000000e+00> : vector<2x256xf32>
    %22 = tpu.matmul %21, %20, %cst_11 {dimension_numbers = #tpu.dot_dimension_numbers<[1], [0], [0], [1], [0, 0, 1, 1], [], []>} : vector<2x32xbf16>, vector<32x256xbf16>, vector<2x256xf32> -> vector<2x256xf32>
    %cst_12 = arith.constant 6.250000e-02 : f32
    %23 = vector.broadcast %cst_12 : f32 to vector<2x256xf32>
    %24 = arith.mulf %22, %23 : vector<2x256xf32>
    %25 = arith.truncf %24 : vector<2x256xf32> to vector<2x256xbf16>
    %c0_13 = arith.constant 0 : index
    %c0_14 = arith.constant 0 : index
    %26 = vector.load %arg5[%c0_13, %c0_14] : memref<256x256xbf16, #tpu.memory_space<vmem>>, vector<256x256xbf16>
    %cst_15 = arith.constant dense<0.000000e+00> : vector<2x256xf32>
    %27 = tpu.matmul %25, %26, %cst_15 {dimension_numbers = #tpu.dot_dimension_numbers<[1], [0], [0], [1], [0, 0, 1, 1], [], []>} : vector<2x256xbf16>, vector<256x256xbf16>, vector<2x256xf32> -> vector<2x256xf32>
    %c0_16 = arith.constant 0 : index
    %c0_17 = arith.constant 0 : index
    %28 = vector.load %arg6[%c0_16, %c0_17] : memref<1x256xf32, #tpu.memory_space<vmem>>, vector<1x256xf32>
    %29 = vector.broadcast %28 : vector<1x256xf32> to vector<2x256xf32>
    %30 = arith.addf %27, %29 : vector<2x256xf32>
    %c0_18 = arith.constant 0 : index
    %c0_19 = arith.constant 0 : index
    %31 = vector.load %arg7[%c0_18, %c0_19] : memref<2x256xf32, #tpu.memory_space<vmem>>, vector<2x256xf32>
    tpu.vector_store %arg7[%c0_18, %c0_19], %30 {strides = array<i32>} : memref<2x256xf32, #tpu.memory_space<vmem>>, vector<2x256xf32>,
    return
  }
  func.func @transform_0(%arg0: i32) -> (i32, i32) {
    %c0_i32 = arith.constant 0 : i32
    %c0_i32_0 = arith.constant 0 : i32
    return %arg0, %c0_i32 : i32, i32
  }
  func.func @transform_1(%arg0: i32) -> (i32, i32) {
    %c0_i32 = arith.constant 0 : i32
    %c0_i32_0 = arith.constant 0 : i32
    %c0_i32_1 = arith.constant 0 : i32
    return %c0_i32, %c0_i32_0 : i32, i32
  }
  func.func @transform_2(%arg0: i32) -> (i32, i32) {
    %c0_i32 = arith.constant 0 : i32
    %c0_i32_0 = arith.constant 0 : i32
    %c0_i32_1 = arith.constant 0 : i32
    return %c0_i32, %c0_i32_0 : i32, i32
  }
  func.func @transform_3(%arg0: i32) -> (i32, i32) {
    %c0_i32 = arith.constant 0 : i32
    %c0_i32_0 = arith.constant 0 : i32
    %c0_i32_1 = arith.constant 0 : i32
    return %c0_i32, %c0_i32_0 : i32, i32
  }
  func.func @transform_4(%arg0: i32) -> (i32, i32) {
    %c0_i32 = arith.constant 0 : i32
    %c0_i32_0 = arith.constant 0 : i32
    %c0_i32_1 = arith.constant 0 : i32
    return %c0_i32, %c0_i32_0 : i32, i32
  }
  func.func @transform_5(%arg0: i32) -> (i32, i32) {
    %c0_i32 = arith.constant 0 : i32
    %c0_i32_0 = arith.constant 0 : i32
    %c0_i32_1 = arith.constant 0 : i32
    return %c0_i32, %c0_i32_0 : i32, i32
  }
  func.func @transform_6(%arg0: i32) -> (i32, i32) {
    %c0_i32 = arith.constant 0 : i32
    %c0_i32_0 = arith.constant 0 : i32
    return %arg0, %c0_i32 : i32, i32
  }
}

module attributes {stable_mosaic.version = 11 : i64} {
  func.func @_classifier_fwd_kernel(%arg0: i32, %arg1: memref<32x64xbf16, #tpu.memory_space<vmem>>, %arg2: memref<64x256xbf16, #tpu.memory_space<vmem>>, %arg3: memref<1x256xf32, #tpu.memory_space<vmem>>, %arg4: memref<2x32xbf16, #tpu.memory_space<vmem>>, %arg5: memref<256x256xbf16, #tpu.memory_space<vmem>>, %arg6: memref<1x256xf32, #tpu.memory_space<vmem>>, %arg7: memref<2x256xf32, #tpu.memory_space<vmem>>) attributes {dimension_semantics = [#tpu.dimension_semantics<parallel>], iteration_bounds = array<i64: 1>, scalar_prefetch = 0 : i64, scratch_operands = 0 : i64, tpu.core_type = #tpu.core_type<tc>, window_params = [{transform_indices = @transform_0, window_bounds = array<i64: 32, 64>}, {pipeline_mode = #tpu.pipeline_mode<synchronous>, transform_indices = @transform_1, window_bounds = array<i64: 64, 256>}, {pipeline_mode = #tpu.pipeline_mode<synchronous>, transform_indices = @transform_2, window_bounds = array<i64: 1, 256>}, {pipeline_mode = #tpu.pipeline_mode<synchronous>, transform_indices = @transform_3, window_bounds = array<i64: 2, 32>}, {pipeline_mode = #tpu.pipeline_mode<synchronous>, transform_indices = @transform_4, window_bounds = array<i64: 256, 256>}, {pipeline_mode = #tpu.pipeline_mode<synchronous>, transform_indices = @transform_5, window_bounds = array<i64: 1, 256>}, {transform_indices = @transform_6, window_bounds = array<i64: 2, 256>}]} {
    %c0 = arith.constant 0 : index
    %c0_0 = arith.constant 0 : index
    %0 = vector.load %arg1[%c0, %c0_0] : memref<32x64xbf16, #tpu.memory_space<vmem>>, vector<32x64xbf16>
    %c0_1 = arith.constant 0 : index
    %c0_2 = arith.constant 0 : index
    %1 = vector.load %arg2[%c0_1, %c0_2] : memref<64x256xbf16, #tpu.memory_space<vmem>>, vector<64x256xbf16>
    %cst = arith.constant dense<0.000000e+00> : vector<32x256xf32>
    %2 = tpu.matmul %0, %1, %cst {dimension_numbers = #tpu.dot_dimension_numbers<[1], [0], [0], [1], [0, 0, 1, 1], [], []>} : vector<32x64xbf16>, vector<64x256xbf16>, vector<32x256xf32> -> vector<32x256xf32>
    %3 = arith.truncf %2 : vector<32x256xf32> to vector<32x256xbf16>
    %c0_3 = arith.constant 0 : index
    %c0_4 = arith.constant 0 : index
    %4 = vector.load %arg3[%c0_3, %c0_4] : memref<1x256xf32, #tpu.memory_space<vmem>>, vector<1x256xf32>
    %5 = arith.truncf %4 : vector<1x256xf32> to vector<1x256xbf16>
    %6 = vector.broadcast %5 : vector<1x256xbf16> to vector<32x256xbf16>
    %7 = arith.addf %3, %6 : vector<32x256xbf16>
    %8 = arith.mulf %7, %7 : vector<32x256xbf16>
    %9 = arith.mulf %7, %8 : vector<32x256xbf16>
    %cst_5 = arith.constant 4.467770e-02 : bf16
    %10 = vector.broadcast %cst_5 : bf16 to vector<32x256xbf16>
    %11 = arith.mulf %10, %9 : vector<32x256xbf16>
    %12 = arith.addf %7, %11 : vector<32x256xbf16>
    %cst_6 = arith.constant 7.968750e-01 : bf16
    %13 = vector.broadcast %cst_6 : bf16 to vector<32x256xbf16>
    %14 = arith.mulf %13, %12 : vector<32x256xbf16>
    %15 = math.tanh %14 : vector<32x256xbf16>
    %cst_7 = arith.constant 1.000000e+00 : bf16
    %16 = vector.broadcast %cst_7 : bf16 to vector<32x256xbf16>
    %17 = arith.addf %16, %15 : vector<32x256xbf16>
    %cst_8 = arith.constant 5.000000e-01 : bf16
    %18 = vector.broadcast %cst_8 : bf16 to vector<32x256xbf16>
    %19 = arith.mulf %18, %17 : vector<32x256xbf16>
    %20 = arith.mulf %7, %19 : vector<32x256xbf16>
    %c0_9 = arith.constant 0 : index
    %c0_10 = arith.constant 0 : index
    %21 = vector.load %arg4[%c0_9, %c0_10] : memref<2x32xbf16, #tpu.memory_space<vmem>>, vector<2x32xbf16>
    %cst_11 = arith.constant dense<0.000000e+00> : vector<2x256xf32>
    %22 = tpu.matmul %21, %20, %cst_11 {dimension_numbers = #tpu.dot_dimension_numbers<[1], [0], [0], [1], [0, 0, 1, 1], [], []>} : vector<2x32xbf16>, vector<32x256xbf16>, vector<2x256xf32> -> vector<2x256xf32>
    %cst_12 = arith.constant 6.250000e-02 : f32
    %23 = vector.broadcast %cst_12 : f32 to vector<2x256xf32>
    %24 = arith.mulf %22, %23 : vector<2x256xf32>
    %25 = arith.truncf %24 : vector<2x256xf32> to vector<2x256xbf16>
    %c0_13 = arith.constant 0 : index
    %c0_14 = arith.constant 0 : index
    %26 = vector.load %arg5[%c0_13, %c0_14] : memref<256x256xbf16, #tpu.memory_space<vmem>>, vector<256x256xbf16>
    %cst_15 = arith.constant dense<0.000000e+00> : vector<2x256xf32>
    %27 = tpu.matmul %25, %26, %cst_15 {dimension_numbers = #tpu.dot_dimension_numbers<[1], [0], [0], [1], [0, 0, 1, 1], [], []>} : vector<2x256xbf16>, vector<256x256xbf16>, vector<2x256xf32> -> vector<2x256xf32>
    %c0_16 = arith.constant 0 : index
    %c0_17 = arith.constant 0 : index
    %28 = vector.load %arg6[%c0_16, %c0_17] : memref<1x256xf32, #tpu.memory_space<vmem>>, vector<1x256xf32>
    %29 = vector.broadcast %28 : vector<1x256xf32> to vector<2x256xf32>
    %30 = arith.addf %27, %29 : vector<2x256xf32>
    %c0_18 = arith.constant 0 : index
    %c0_19 = arith.constant 0 : index
    %31 = vector.load %arg7[%c0_18, %c0_19] : memref<2x256xf32, #tpu.memory_space<vmem>>, vector<2x256xf32>
    tpu.vector_store %arg7[%c0_18, %c0_19], %30 {strides = array<i32>} : memref<2x256xf32, #tpu.memory_space<vmem>>, vector<2x256xf32>,
    return
  }
  func.func @transform_0(%arg0: i32) -> (i32, i32) {
    %c0_i32 = arith.constant 0 : i32
    %c0_i32_0 = arith.constant 0 : i32
    return %arg0, %c0_i32 : i32, i32
  }
  func.func @transform_1(%arg0: i32) -> (i32, i32) {
    %c0_i32 = arith.constant 0 : i32
    %c0_i32_0 = arith.constant 0 : i32
    %c0_i32_1 = arith.constant 0 : i32
    return %c0_i32, %c0_i32_0 : i32, i32
  }
  func.func @transform_2(%arg0: i32) -> (i32, i32) {
    %c0_i32 = arith.constant 0 : i32
    %c0_i32_0 = arith.constant 0 : i32
    %c0_i32_1 = arith.constant 0 : i32
    return %c0_i32, %c0_i32_0 : i32, i32
  }
  func.func @transform_3(%arg0: i32) -> (i32, i32) {
    %c0_i32 = arith.constant 0 : i32
    %c0_i32_0 = arith.constant 0 : i32
    %c0_i32_1 = arith.constant 0 : i32
    return %c0_i32, %c0_i32_0 : i32, i32
  }
  func.func @transform_4(%arg0: i32) -> (i32, i32) {
    %c0_i32 = arith.constant 0 : i32
    %c0_i32_0 = arith.constant 0 : i32
    %c0_i32_1 = arith.constant 0 : i32
    return %c0_i32, %c0_i32_0 : i32, i32
  }
  func.func @transform_5(%arg0: i32) -> (i32, i32) {
    %c0_i32 = arith.constant 0 : i32
    %c0_i32_0 = arith.constant 0 : i32
    %c0_i32_1 = arith.constant 0 : i32
    return %c0_i32, %c0_i32_0 : i32, i32
  }
  func.func @transform_6(%arg0: i32) -> (i32, i32) {
    %c0_i32 = arith.constant 0 : i32
    %c0_i32_0 = arith.constant 0 : i32
    return %arg0, %c0_i32 : i32, i32
  }
}

</mosaic_0001>

<llo_original>
// kernel: tpu_custom_call.1
$region0: #{tpu_custom_call.1}
  #allocation0 [shape = 'u32[]', space=smem, size = 0x4, offset = 0x4, fixed_abs, tag = 'smem constant byte address 0x4 - core index']
  #allocation1 [shape = 'u32[72,128]{1,0:T(1,128)}', space=vmem, size = 0x9000, scoped, tag = 'internal scratch']
  %s0 = inlined_call_operand.hbm [shape: bf16[32,64], index: 0, kind: input, shape index: {}]
  %s1 = inlined_call_operand.hbm [shape: bf16[64,256], index: 1, kind: input, shape index: {}]
  %s2 = inlined_call_operand.hbm [shape: f32[1,256], index: 2, kind: input, shape index: {}]
  %s3 = inlined_call_operand.vmem [shape: bf16[2,32], index: 3, kind: input, shape index: {}]
  %s4 = inlined_call_operand.hbm [shape: bf16[256,256], index: 4, kind: input, shape index: {}]
  %s5 = inlined_call_operand.vmem [shape: f32[1,256], index: 5, kind: input, shape index: {}]
  %s6 = inlined_call_operand.hbm [shape: f32[2,256], index: 6, kind: output, shape index: {}]
  %s7 = sld [smem:[#allocation0]]
  $region50: #{tpu_custom_call.1} parent=0
    _
  %s9 = ssub.s32 1, %s7
  %s10 = scalar_select 0, %s9, %s7
  $region1: #{tpu_custom_call.1} parent=0
    #allocation2 [shape = 'u8[8192]{0}', space=vmem, size = 0x2000, scoped, tag = 'input window, operand 0, single buffered']
    #allocation3 [shape = 's32[1]{0}', space=sflag, size = 0x4, scoped, tag = 'scoped memory for tpu_custom_call.1']
    #allocation4 [shape = 's32[1]{0}', space=sflag, size = 0x4, scoped, tag = 'scoped memory for tpu_custom_call.1']
    #allocation5 [shape = 'u8[32768]{0}', space=vmem, size = 0x8000, scoped, tag = 'input window, operand 1, single buffered']
    #allocation6 [shape = 's32[1]{0}', space=sflag, size = 0x4, scoped, tag = 'scoped memory for tpu_custom_call.1']
    #allocation7 [shape = 'u8[1024]{0}', space=vmem, size = 0x400, scoped, tag = 'input window, operand 2, single buffered']
    #allocation8 [shape = 'u8[131072]{0}', space=vmem, size = 0x20000, scoped, tag = 'input window, operand 4, single buffered']
    #allocation9 [shape = 's32[1]{0}', space=sflag, size = 0x4, scoped, tag = 'scoped memory for tpu_custom_call.1']
    #allocation10 [shape = 'u8[2048]{0}', space=vmem, size = 0x800, scoped, tag = 'output window, operand 0, single buffered']
    %11 = vsyncpa [#allocation3], 0
    %12 = vsyncpa [#allocation6], 0
    %13 = vsyncpa [#allocation9], 0
    %14 = vsyncpa [#allocation4], 0
    // Predicated region
    $region2: #{tpu_custom_call.1} parent=1 // pred_check
      _
    $region3: #{tpu_custom_call.1} parent=1 // pred_check_branch
      %16 = sbr.rel (0) target = $region5
    $region4: #{tpu_custom_call.1} parent=1 // pred_region
      %18 = vsyncadd [#allocation3], 0
      %s19 = sshll.u32 %s0, 4
      %s20 = int_to_ptr.hbm [resolvable:$true] %s19
      %s21 = sshll.u32 [#allocation2], 4
      %s22 = int_to_ptr.vmem [resolvable:$true] %s21
      %27 = dma.hbm_to_vmem [thread:$0]  %s20, 256, %s22, [#allocation3], 64, 64, 4
    $region5: #{tpu_custom_call.1} parent=1 // pred_fallthru
      _
    // Predicated region
    $region6: #{tpu_custom_call.1} parent=1 // pred_check
      _
    $region7: #{tpu_custom_call.1} parent=1 // pred_check_branch
      %29 = sbr.rel (0) target = $region9
    $region8: #{tpu_custom_call.1} parent=1 // pred_region
      %31 = vsyncadd [#allocation6], 0
      %s32 = sshll.u32 %s1, 4
      %s33 = int_to_ptr.hbm [resolvable:$true] %s32
      %s34 = sshll.u32 [#allocation5], 4
      %s35 = int_to_ptr.vmem [resolvable:$true] %s34
      %40 = dma.hbm_to_vmem [thread:$0]  %s33, 1024, %s35, [#allocation6], 128, 128, 8
    $region9: #{tpu_custom_call.1} parent=1 // pred_fallthru
      _
    // Predicated region
    $region10: #{tpu_custom_call.1} parent=1 // pred_check
      _
    $region11: #{tpu_custom_call.1} parent=1 // pred_check_branch
      %42 = sbr.rel (0) target = $region13
    $region12: #{tpu_custom_call.1} parent=1 // pred_region
      %44 = vsyncadd [#allocation6], 0
      %s46 = sshll.u32 %s2, 4
      %s47 = int_to_ptr.hbm [resolvable:$true] %s46
      %s48 = sshll.u32 [#allocation7], 4
      %s49 = int_to_ptr.vmem [resolvable:$true] %s48
      %51 = dma.hbm_to_vmem [thread:$0]  %s47, 32, %s49, [#allocation6]
    $region13: #{tpu_custom_call.1} parent=1 // pred_fallthru
      _
    // Predicated region
    $region14: #{tpu_custom_call.1} parent=1 // pred_check
      _
    $region15: #{tpu_custom_call.1} parent=1 // pred_check_branch
      %53 = sbr.rel (0) target = $region17
    $region16: #{tpu_custom_call.1} parent=1 // pred_region
      _
    $region17: #{tpu_custom_call.1} parent=1 // pred_fallthru
      _
    // Predicated region
    $region18: #{tpu_custom_call.1} parent=1 // pred_check
      _
    $region19: #{tpu_custom_call.1} parent=1 // pred_check_branch
      %55 = sbr.rel (0) target = $region21
    $region20: #{tpu_custom_call.1} parent=1 // pred_region
      %57 = vsyncadd [#allocation9], 0
      %s58 = sshll.u32 %s4, 4
      %s59 = int_to_ptr.hbm [resolvable:$true] %s58
      %s60 = sshll.u32 [#allocation8], 4
      %s61 = int_to_ptr.vmem [resolvable:$true] %s60
      %66 = dma.hbm_to_vmem [thread:$0]  %s59, 4096, %s61, [#allocation9], 128, 128, 8
    $region21: #{tpu_custom_call.1} parent=1 // pred_fallthru
      _
    // Predicated region
    $region22: #{tpu_custom_call.1} parent=1 // pred_check
      _
    $region23: #{tpu_custom_call.1} parent=1 // pred_check_branch
      %68 = sbr.rel (0) target = $region25
    $region24: #{tpu_custom_call.1} parent=1 // pred_region
      _
    $region25: #{tpu_custom_call.1} parent=1 // pred_fallthru
      _
    // Predicated region
    $region26: #{tpu_custom_call.1} parent=1 // pred_check
      _
    $region27: #{tpu_custom_call.1} parent=1 // pred_check_branch
      %70 = sbr.rel (0) target = $region29
    $region28: #{tpu_custom_call.1} parent=1 // pred_region
      %72 = dma.done [#allocation3], 256
    $region29: #{tpu_custom_call.1} parent=1 // pred_fallthru
      _
    // Predicated region
    $region30: #{tpu_custom_call.1} parent=1 // pred_check
      _
    $region31: #{tpu_custom_call.1} parent=1 // pred_check_branch
      %74 = sbr.rel (0) target = $region33
    $region32: #{tpu_custom_call.1} parent=1 // pred_region
      %76 = dma.done [#allocation6], 1024
    $region33: #{tpu_custom_call.1} parent=1 // pred_fallthru
      _
    // Predicated region
    $region34: #{tpu_custom_call.1} parent=1 // pred_check
      _
    $region35: #{tpu_custom_call.1} parent=1 // pred_check_branch
      %78 = sbr.rel (0) target = $region37
    $region36: #{tpu_custom_call.1} parent=1 // pred_region
      %80 = dma.done [#allocation6], 32
    $region37: #{tpu_custom_call.1} parent=1 // pred_fallthru
      _
    // Predicated region
    $region38: #{tpu_custom_call.1} parent=1 // pred_check
      _
    $region39: #{tpu_custom_call.1} parent=1 // pred_check_branch
      %82 = sbr.rel (0) target = $region41
    $region40: #{tpu_custom_call.1} parent=1 // pred_region
      %84 = dma.done [#allocation9], 4096
    $region41: #{tpu_custom_call.1} parent=1 // pred_fallthru
      _
    %v86 = vld [vmem:[#allocation2] sm:$0xf]
    %v87 = vld [vmem:[#allocation2 + $0x4] sm:$0xf]
    %v88 = vld [vmem:[#allocation2 + $0x8] sm:$0xf]
    %v89 = vld [vmem:[#allocation2 + $0xc] sm:$0xf]
    %v90 = vld [vmem:[#allocation5] sm:$0xff]
    %v91 = vld [vmem:[#allocation5 + $0x8] sm:$0xff]
    %v92 = vld [vmem:[#allocation5 + $0x10] sm:$0xff]
    %v93 = vld [vmem:[#allocation5 + $0x18] sm:$0xff]
    %v94 = vld [vmem:[#allocation5 + $0x20] sm:$0xff]
    %v95 = vld [vmem:[#allocation5 + $0x28] sm:$0xff]
    %v96 = vld [vmem:[#allocation5 + $0x30] sm:$0xff]
    %v97 = vld [vmem:[#allocation5 + $0x38] sm:$0xff]
    %v102 = vunpack.c.l.b16 %v86
    %v103 = vunpack.c.l.b16 %v87
    %v104 = vunpack.c.l.b16 %v88
    %v105 = vunpack.c.l.b16 %v89
    %v106 = vpack.c.b16 %v103, %v102
    %v107 = vpack.c.b16 %v105, %v104
    %v116 = vunpack.c.l.b16 %v90
    %v117 = vunpack.c.h.b16 %v90
    %v118 = vunpack.c.l.b16 %v91
    %v119 = vunpack.c.h.b16 %v91
    %v120 = vunpack.c.l.b16 %v92
    %v121 = vunpack.c.h.b16 %v92
    %v122 = vunpack.c.l.b16 %v93
    %v123 = vunpack.c.h.b16 %v93
    %v124 = vunpack.c.l.b16 %v94
    %v125 = vunpack.c.h.b16 %v94
    %v126 = vunpack.c.l.b16 %v95
    %v127 = vunpack.c.h.b16 %v95
    %v128 = vunpack.c.l.b16 %v96
    %v129 = vunpack.c.h.b16 %v96
    %v130 = vunpack.c.l.b16 %v97
    %v131 = vunpack.c.h.b16 %v97
    %v132 = vpack.c.b16 %v118, %v116
    %v133 = vpack.c.b16 %v119, %v117
    %v134 = vpack.c.b16 %v122, %v120
    %v135 = vpack.c.b16 %v123, %v121
    %v136 = vpack.c.b16 %v126, %v124
    %v137 = vpack.c.b16 %v127, %v125
    %v138 = vpack.c.b16 %v130, %v128
    %v139 = vpack.c.b16 %v131, %v129
    %vm148 = vcmask 523264
    %v150 = vsel %vm148, %v106, 0
    %v153 = vsel %vm148, %v107, 0
    %155 = vmatpush.bf16.msra.mxu0 0
    %156 = vmatpush.bf16.msra.mxu0 0
    %157 = vmatpush.bf16.msra.mxu0 0
    %158 = vmatpush.bf16.msra.mxu0 0
    %159 = vmatpush.bf16.msra.mxu0 %v138
    %160 = vmatpush.bf16.msra.mxu0 %v136
    %161 = vmatpush.bf16.msra.mxu0 %v134
    %162 = vmatpush.bf16.msra.mxu0 %v132
    %163 = vmatmul.bf16.gmra.mxu0 %v150
    %v164 = vpop.f32.mrf.mxu0
    %v165 = vadd.f32 0.0, %v164
    %v166 = vpop.f32.mrf.mxu0
    %v167 = vadd.f32 0.0, %v166
    %168 = vmatmul.bf16.gmra.mxu0 %v153
    %v169 = vpop.f32.mrf.mxu0
    %v170 = vadd.f32 0.0, %v169
    %v171 = vpop.f32.mrf.mxu0
    %v172 = vadd.f32 0.0, %v171
    %173 = vdwg.mxu0
    %174 = vmatpush.bf16.msra.mxu0 0
    %175 = vmatpush.bf16.msra.mxu0 0
    %176 = vmatpush.bf16.msra.mxu0 0
    %177 = vmatpush.bf16.msra.mxu0 0
    %178 = vmatpush.bf16.msra.mxu0 %v139
    %179 = vmatpush.bf16.msra.mxu0 %v137
    %180 = vmatpush.bf16.msra.mxu0 %v135
    %181 = vmatpush.bf16.msra.mxu0 %v133
    %182 = vmatmul.bf16.gmra.mxu0 %v150
    %v183 = vpop.f32.mrf.mxu0
    %v184 = vadd.f32 0.0, %v183
    %v185 = vpop.f32.mrf.mxu0
    %v186 = vadd.f32 0.0, %v185
    %187 = vmatmul.bf16.gmra.mxu0 %v153
    %v188 = vpop.f32.mrf.mxu0
    %v189 = vadd.f32 0.0, %v188
    %v190 = vpop.f32.mrf.mxu0
    %v191 = vadd.f32 0.0, %v190
    %192 = vdwg.mxu0
    %v193 = vpack.c.bf16 %v184, %v165
    %v194 = vpack.c.bf16 %v186, %v167
    %v195 = vpack.c.bf16 %v189, %v170
    %v196 = vpack.c.bf16 %v191, %v172
    %v197 = vld [vmem:[#allocation7] sm:$0x3]
    %v199 = vperm.slane %v197, 0
    %v200 = vperm.slane %v197, 1
    %v203 = vpack.c.bf16 %v200, %v199
    %v205 = vunpack.c.l.b16 %v203
    %v206 = vunpack.c.h.b16 %v203
    %v207 = vpack.c.b16 %v205, %v205
    %v208 = vpack.c.b16 %v206, %v206
    %v210 = vpack.i.b16 %v207, %v207
    %v212 = vperm.slane %v210, 0
    %v214 = vpack.i.b16 %v208, %v208
    %v216 = vperm.slane %v214, 0
    %v217 = vunpack.c.l.bf16 %v193
    %v218 = vunpack.c.h.bf16 %v193
    %v219 = vunpack.c.l.bf16 %v194
    %v220 = vunpack.c.h.bf16 %v194
    %v221 = vunpack.c.l.bf16 %v195
    %v222 = vunpack.c.h.bf16 %v195
    %v223 = vunpack.c.l.bf16 %v196
    %v224 = vunpack.c.h.bf16 %v196
    %v225 = vunpack.c.l.bf16 %v212
    %v226 = vunpack.c.l.bf16 %v216
    %v227 = vadd.f32 %v217, %v225
    %v228 = vadd.f32 %v218, %v226
    %v229 = vadd.f32 %v219, %v225
    %v230 = vadd.f32 %v220, %v226
    %v231 = vadd.f32 %v221, %v225
    %v232 = vadd.f32 %v222, %v226
    %v233 = vadd.f32 %v223, %v225
    %v234 = vadd.f32 %v224, %v226
    %v235 = vpack.c.bf16 %v228, %v227
    %v236 = vpack.c.bf16 %v230, %v229
    %v237 = vpack.c.bf16 %v232, %v231
    %v238 = vpack.c.bf16 %v234, %v233
    %v239 = vunpack.c.l.bf16 %v235
    %v240 = vunpack.c.h.bf16 %v235
    %v241 = vunpack.c.l.bf16 %v236
    %v242 = vunpack.c.h.bf16 %v236
    %v243 = vunpack.c.l.bf16 %v237
    %v244 = vunpack.c.h.bf16 %v237
    %v245 = vunpack.c.l.bf16 %v238
    %v246 = vunpack.c.h.bf16 %v238
    %v247 = vmul.f32 %v239, %v239
    %v248 = vmul.f32 %v240, %v240
    %v249 = vmul.f32 %v241, %v241
    %v250 = vmul.f32 %v242, %v242
    %v251 = vmul.f32 %v243, %v243
    %v252 = vmul.f32 %v244, %v244
    %v253 = vmul.f32 %v245, %v245
    %v254 = vmul.f32 %v246, %v246
    %v255 = vpack.c.bf16 %v248, %v247
    %v256 = vpack.c.bf16 %v250, %v249
    %v257 = vpack.c.bf16 %v252, %v251
    %v258 = vpack.c.bf16 %v254, %v253
    %v259 = vunpack.c.l.bf16 %v255
    %v260 = vunpack.c.h.bf16 %v255
    %v261 = vunpack.c.l.bf16 %v256
    %v262 = vunpack.c.h.bf16 %v256
    %v263 = vunpack.c.l.bf16 %v257
    %v264 = vunpack.c.h.bf16 %v257
    %v265 = vunpack.c.l.bf16 %v258
    %v266 = vunpack.c.h.bf16 %v258
    %v267 = vmul.f32 %v239, %v259
    %v268 = vmul.f32 %v240, %v260
    %v269 = vmul.f32 %v241, %v261
    %v270 = vmul.f32 %v242, %v262
    %v271 = vmul.f32 %v243, %v263
    %v272 = vmul.f32 %v244, %v264
    %v273 = vmul.f32 %v245, %v265
    %v274 = vmul.f32 %v246, %v266
    %v275 = vpack.c.bf16 %v268, %v267
    %v276 = vpack.c.bf16 %v270, %v269
    %v277 = vpack.c.bf16 %v272, %v271
    %v278 = vpack.c.bf16 %v274, %v273
    %v279 = vunpack.c.l.bf16 %v275
    %v280 = vunpack.c.h.bf16 %v275
    %v281 = vunpack.c.l.bf16 %v276
    %v282 = vunpack.c.h.bf16 %v276
    %v283 = vunpack.c.l.bf16 %v277
    %v284 = vunpack.c.h.bf16 %v277
    %v285 = vunpack.c.l.bf16 %v278
    %v286 = vunpack.c.h.bf16 %v278
    %v287 = vmul.f32 %v279, 0.044677734
    %v288 = vmul.f32 %v280, 0.044677734
    %v289 = vmul.f32 %v281, 0.044677734
    %v290 = vmul.f32 %v282, 0.044677734
    %v291 = vmul.f32 %v283, 0.044677734
    %v292 = vmul.f32 %v284, 0.044677734
    %v293 = vmul.f32 %v285, 0.044677734
    %v294 = vmul.f32 %v286, 0.044677734
    %v295 = vpack.c.bf16 %v288, %v287
    %v296 = vpack.c.bf16 %v290, %v289
    %v297 = vpack.c.bf16 %v292, %v291
    %v298 = vpack.c.bf16 %v294, %v293
    %v299 = vunpack.c.l.bf16 %v295
    %v300 = vunpack.c.h.bf16 %v295
    %v301 = vunpack.c.l.bf16 %v296
    %v302 = vunpack.c.h.bf16 %v296
    %v303 = vunpack.c.l.bf16 %v297
    %v304 = vunpack.c.h.bf16 %v297
    %v305 = vunpack.c.l.bf16 %v298
    %v306 = vunpack.c.h.bf16 %v298
    %v307 = vadd.f32 %v239, %v299
    %v308 = vadd.f32 %v240, %v300
    %v309 = vadd.f32 %v241, %v301
    %v310 = vadd.f32 %v242, %v302
    %v311 = vadd.f32 %v243, %v303
    %v312 = vadd.f32 %v244, %v304
    %v313 = vadd.f32 %v245, %v305
    %v314 = vadd.f32 %v246, %v306
    %v315 = vpack.c.bf16 %v308, %v307
    %v316 = vpack.c.bf16 %v310, %v309
    %v317 = vpack.c.bf16 %v312, %v311
    %v318 = vpack.c.bf16 %v314, %v313
    %v319 = vunpack.c.l.bf16 %v315
    %v320 = vunpack.c.h.bf16 %v315
    %v321 = vunpack.c.l.bf16 %v316
    %v322 = vunpack.c.h.bf16 %v316
    %v323 = vunpack.c.l.bf16 %v317
    %v324 = vunpack.c.h.bf16 %v317
    %v325 = vunpack.c.l.bf16 %v318
    %v326 = vunpack.c.h.bf16 %v318
    %v327 = vmul.f32 %v319, 0.796875
    %v328 = vmul.f32 %v320, 0.796875
    %v329 = vmul.f32 %v321, 0.796875
    %v330 = vmul.f32 %v322, 0.796875
    %v331 = vmul.f32 %v323, 0.796875
    %v332 = vmul.f32 %v324, 0.796875
    %v333 = vmul.f32 %v325, 0.796875
    %v334 = vmul.f32 %v326, 0.796875
    %v335 = vpack.c.bf16 %v328, %v327
    %v336 = vpack.c.bf16 %v330, %v329
    %v337 = vpack.c.bf16 %v332, %v331
    %v338 = vpack.c.bf16 %v334, %v333
    %v339 = vunpack.c.l.bf16 %v335
    %v340 = vunpack.c.h.bf16 %v335
    %v341 = vunpack.c.l.bf16 %v336
    %v342 = vunpack.c.h.bf16 %v336
    %v343 = vunpack.c.l.bf16 %v337
    %v344 = vunpack.c.h.bf16 %v337
    %v345 = vunpack.c.l.bf16 %v338
    %v346 = vunpack.c.h.bf16 %v338
    %v347 = vtanh.pop %v339
    %v348 = vtanh.pop %v340
    %v349 = vtanh.pop %v341
    %v350 = vtanh.pop %v342
    %v351 = vtanh.pop %v343
    %v352 = vtanh.pop %v344
    %v353 = vtanh.pop %v345
    %v354 = vtanh.pop %v346
    %v355 = vpack.c.bf16 %v348, %v347
    %v356 = vpack.c.bf16 %v350, %v349
    %v357 = vpack.c.bf16 %v352, %v351
    %v358 = vpack.c.bf16 %v354, %v353
    %v359 = vunpack.c.l.bf16 %v355
    %v360 = vunpack.c.h.bf16 %v355
    %v361 = vunpack.c.l.bf16 %v356
    %v362 = vunpack.c.h.bf16 %v356
    %v363 = vunpack.c.l.bf16 %v357
    %v364 = vunpack.c.h.bf16 %v357
    %v365 = vunpack.c.l.bf16 %v358
    %v366 = vunpack.c.h.bf16 %v358
    %v367 = vadd.f32 %v359, 1.0
    %v368 = vadd.f32 %v360, 1.0
    %v369 = vadd.f32 %v361, 1.0
    %v370 = vadd.f32 %v362, 1.0
    %v371 = vadd.f32 %v363, 1.0
    %v372 = vadd.f32 %v364, 1.0
    %v373 = vadd.f32 %v365, 1.0
    %v374 = vadd.f32 %v366, 1.0
    %v375 = vpack.c.bf16 %v368, %v367
    %v376 = vpack.c.bf16 %v370, %v369
    %v377 = vpack.c.bf16 %v372, %v371
    %v378 = vpack.c.bf16 %v374, %v373
    %v379 = vunpack.c.l.bf16 %v375
    %v380 = vunpack.c.h.bf16 %v375
    %v381 = vunpack.c.l.bf16 %v376
    %v382 = vunpack.c.h.bf16 %v376
    %v383 = vunpack.c.l.bf16 %v377
    %v384 = vunpack.c.h.bf16 %v377
    %v385 = vunpack.c.l.bf16 %v378
    %v386 = vunpack.c.h.bf16 %v378
    %v387 = vmul.f32 %v379, 0.5
    %v388 = vmul.f32 %v380, 0.5
    %v389 = vmul.f32 %v381, 0.5
    %v390 = vmul.f32 %v382, 0.5
    %v391 = vmul.f32 %v383, 0.5
    %v392 = vmul.f32 %v384, 0.5
    %v393 = vmul.f32 %v385, 0.5
    %v394 = vmul.f32 %v386, 0.5
    %v395 = vpack.c.bf16 %v388, %v387
    %v396 = vpack.c.bf16 %v390, %v389
    %v397 = vpack.c.bf16 %v392, %v391
    %v398 = vpack.c.bf16 %v394, %v393
    %v399 = vunpack.c.l.bf16 %v395
    %v400 = vunpack.c.h.bf16 %v395
    %v401 = vunpack.c.l.bf16 %v396
    %v402 = vunpack.c.h.bf16 %v396
    %v403 = vunpack.c.l.bf16 %v397
    %v404 = vunpack.c.h.bf16 %v397
    %v405 = vunpack.c.l.bf16 %v398
    %v406 = vunpack.c.h.bf16 %v398
    %v407 = vmul.f32 %v239, %v399
    %v408 = vmul.f32 %v240, %v400
    %v409 = vmul.f32 %v241, %v401
    %v410 = vmul.f32 %v242, %v402
    %v411 = vmul.f32 %v243, %v403
    %v412 = vmul.f32 %v244, %v404
    %v413 = vmul.f32 %v245, %v405
    %v414 = vmul.f32 %v246, %v406
    %v415 = vpack.c.bf16 %v409, %v407
    %v416 = vpack.c.bf16 %v410, %v408
    %v417 = vpack.c.bf16 %v413, %v411
    %v418 = vpack.c.bf16 %v414, %v412
    %v419 = vld [vmem:[%s3] sm:$0x1]
    %vm420 = vcmask 261120
    %v422 = vsel %vm420, %v419, 0
    %424 = vmatpush.bf16.msra.mxu0 0
    %425 = vmatpush.bf16.msra.mxu0 0
    %426 = vmatpush.bf16.msra.mxu0 0
    %427 = vmatpush.bf16.msra.mxu0 0
    %428 = vmatpush.bf16.msra.mxu0 0
    %429 = vmatpush.bf16.msra.mxu0 0
    %430 = vmatpush.bf16.msra.mxu0 %v417
    %431 = vmatpush.bf16.msra.mxu0 %v415
    %432 = vmatmul.bf16.gmra.mxu0 %v422
    %v433 = vpop.f32.mrf.mxu0
    %v434 = vadd.f32 0.0, %v433
    %v435 = vpop.f32.mrf.mxu0
    %436 = vdwg.mxu0
    %437 = vmatpush.bf16.msra.mxu0 0
    %438 = vmatpush.bf16.msra.mxu0 0
    %439 = vmatpush.bf16.msra.mxu0 0
    %440 = vmatpush.bf16.msra.mxu0 0
    %441 = vmatpush.bf16.msra.mxu0 0
    %442 = vmatpush.bf16.msra.mxu0 0
    %443 = vmatpush.bf16.msra.mxu0 %v418
    %444 = vmatpush.bf16.msra.mxu0 %v416
    %445 = vmatmul.bf16.gmra.mxu0 %v422
    %v446 = vpop.f32.mrf.mxu0
    %v447 = vadd.f32 0.0, %v446
    %v448 = vpop.f32.mrf.mxu0
    %449 = vdwg.mxu0
    %v450 = vmul.f32 %v434, 0.0625
    %v451 = vmul.f32 %v447, 0.0625
    %v452 = vpack.c.bf16 %v450, %v450
    %v453 = vpack.c.bf16 %v451, %v451
    %v454 = vld [vmem:[#allocation8] sm:$0xff]
    %v455 = vld [vmem:[#allocation8 + $0x8] sm:$0xff]
    %v456 = vld [vmem:[#allocation8 + $0x10] sm:$0xff]
    %v457 = vld [vmem:[#allocation8 + $0x18] sm:$0xff]
    %v458 = vld [vmem:[#allocation8 + $0x20] sm:$0xff]
    %v459 = vld [vmem:[#allocation8 + $0x28] sm:$0xff]
    %v460 = vld [vmem:[#allocation8 + $0x30] sm:$0xff]
    %v461 = vld [vmem:[#allocation8 + $0x38] sm:$0xff]
    %v462 = vld [vmem:[#allocation8 + $0x40] sm:$0xff]
    %v463 = vld [vmem:[#allocation8 + $0x48] sm:$0xff]
    %v464 = vld [vmem:[#allocation8 + $0x50] sm:$0xff]
    %v465 = vld [vmem:[#allocation8 + $0x58] sm:$0xff]
    %v466 = vld [vmem:[#allocation8 + $0x60] sm:$0xff]
    %v467 = vld [vmem:[#allocation8 + $0x68] sm:$0xff]
    %v468 = vld [vmem:[#allocation8 + $0x70] sm:$0xff]
    %v469 = vld [vmem:[#allocation8 + $0x78] sm:$0xff]
    %v470 = vld [vmem:[#allocation8 + $0x80] sm:$0xff]
    %v471 = vld [vmem:[#allocation8 + $0x88] sm:$0xff]
    %v472 = vld [vmem:[#allocation8 + $0x90] sm:$0xff]
    %v473 = vld [vmem:[#allocation8 + $0x98] sm:$0xff]
    %v474 = vld [vmem:[#allocation8 + $0xa0] sm:$0xff]
    %v475 = vld [vmem:[#allocation8 + $0xa8] sm:$0xff]
    %v476 = vld [vmem:[#allocation8 + $0xb0] sm:$0xff]
    %v477 = vld [vmem:[#allocation8 + $0xb8] sm:$0xff]
    %v478 = vld [vmem:[#allocation8 + $0xc0] sm:$0xff]
    %v479 = vld [vmem:[#allocation8 + $0xc8] sm:$0xff]
    %v480 = vld [vmem:[#allocation8 + $0xd0] sm:$0xff]
    %v481 = vld [vmem:[#allocation8 + $0xd8] sm:$0xff]
    %v482 = vld [vmem:[#allocation8 + $0xe0] sm:$0xff]
    %v483 = vld [vmem:[#allocation8 + $0xe8] sm:$0xff]
    %v484 = vld [vmem:[#allocation8 + $0xf0] sm:$0xff]
    %v485 = vld [vmem:[#allocation8 + $0xf8] sm:$0xff]
    %v486 = vld [vmem:[%s5] sm:$0x3]
    %v488 = vperm.slane %v486, 0
    %v489 = vperm.slane %v486, 1
    %v524 = vunpack.c.l.b16 %v454
    %v525 = vunpack.c.h.b16 %v454
    %v526 = vunpack.c.l.b16 %v455
    %v527 = vunpack.c.h.b16 %v455
    %v528 = vunpack.c.l.b16 %v456
    %v529 = vunpack.c.h.b16 %v456
    %v530 = vunpack.c.l.b16 %v457
    %v531 = vunpack.c.h.b16 %v457
    %v532 = vunpack.c.l.b16 %v458
    %v533 = vunpack.c.h.b16 %v458
    %v534 = vunpack.c.l.b16 %v459
    %v535 = vunpack.c.h.b16 %v459
    %v536 = vunpack.c.l.b16 %v460
    %v537 = vunpack.c.h.b16 %v460
    %v538 = vunpack.c.l.b16 %v461
    %v539 = vunpack.c.h.b16 %v461
    %v540 = vunpack.c.l.b16 %v462
    %v541 = vunpack.c.h.b16 %v462
    %v542 = vunpack.c.l.b16 %v463
    %v543 = vunpack.c.h.b16 %v463
    %v544 = vunpack.c.l.b16 %v464
    %v545 = vunpack.c.h.b16 %v464
    %v546 = vunpack.c.l.b16 %v465
    %v547 = vunpack.c.h.b16 %v465
    %v548 = vunpack.c.l.b16 %v466
    %v549 = vunpack.c.h.b16 %v466
    %v550 = vunpack.c.l.b16 %v467
    %v551 = vunpack.c.h.b16 %v467
    %v552 = vunpack.c.l.b16 %v468
    %v553 = vunpack.c.h.b16 %v468
    %v554 = vunpack.c.l.b16 %v469
    %v555 = vunpack.c.h.b16 %v469
    %v556 = vunpack.c.l.b16 %v470
    %v557 = vunpack.c.h.b16 %v470
    %v558 = vunpack.c.l.b16 %v471
    %v559 = vunpack.c.h.b16 %v471
    %v560 = vunpack.c.l.b16 %v472
    %v561 = vunpack.c.h.b16 %v472
    %v562 = vunpack.c.l.b16 %v473
    %v563 = vunpack.c.h.b16 %v473
    %v564 = vunpack.c.l.b16 %v474
    %v565 = vunpack.c.h.b16 %v474
    %v566 = vunpack.c.l.b16 %v475
    %v567 = vunpack.c.h.b16 %v475
    %v568 = vunpack.c.l.b16 %v476
    %v569 = vunpack.c.h.b16 %v476
    %v570 = vunpack.c.l.b16 %v477
    %v571 = vunpack.c.h.b16 %v477
    %v572 = vunpack.c.l.b16 %v478
    %v573 = vunpack.c.h.b16 %v478
    %v574 = vunpack.c.l.b16 %v479
    %v575 = vunpack.c.h.b16 %v479
    %v576 = vunpack.c.l.b16 %v480
    %v577 = vunpack.c.h.b16 %v480
    %v578 = vunpack.c.l.b16 %v481
    %v579 = vunpack.c.h.b16 %v481
    %v580 = vunpack.c.l.b16 %v482
    %v581 = vunpack.c.h.b16 %v482
    %v582 = vunpack.c.l.b16 %v483
    %v583 = vunpack.c.h.b16 %v483
    %v584 = vunpack.c.l.b16 %v484
    %v585 = vunpack.c.h.b16 %v484
    %v586 = vunpack.c.l.b16 %v485
    %v587 = vunpack.c.h.b16 %v485
    %v588 = vpack.c.b16 %v526, %v524
    %v589 = vpack.c.b16 %v527, %v525
    %v590 = vpack.c.b16 %v530, %v528
    %v591 = vpack.c.b16 %v531, %v529
    %v592 = vpack.c.b16 %v534, %v532
    %v593 = vpack.c.b16 %v535, %v533
    %v594 = vpack.c.b16 %v538, %v536
    %v595 = vpack.c.b16 %v539, %v537
    %v596 = vpack.c.b16 %v542, %v540
    %v597 = vpack.c.b16 %v543, %v541
    %v598 = vpack.c.b16 %v546, %v544
    %v599 = vpack.c.b16 %v547, %v545
    %v600 = vpack.c.b16 %v550, %v548
    %v601 = vpack.c.b16 %v551, %v549
    %v602 = vpack.c.b16 %v554, %v552
    %v603 = vpack.c.b16 %v555, %v553
    %v604 = vpack.c.b16 %v558, %v556
    %v605 = vpack.c.b16 %v559, %v557
    %v606 = vpack.c.b16 %v562, %v560
    %v607 = vpack.c.b16 %v563, %v561
    %v608 = vpack.c.b16 %v566, %v564
    %v609 = vpack.c.b16 %v567, %v565
    %v610 = vpack.c.b16 %v570, %v568
    %v611 = vpack.c.b16 %v571, %v569
    %v612 = vpack.c.b16 %v574, %v572
    %v613 = vpack.c.b16 %v575, %v573
    %v614 = vpack.c.b16 %v578, %v576
    %v615 = vpack.c.b16 %v579, %v577
    %v616 = vpack.c.b16 %v582, %v580
    %v617 = vpack.c.b16 %v583, %v581
    %v618 = vpack.c.b16 %v586, %v584
    %v619 = vpack.c.b16 %v587, %v585
    %652 = vmatpush.bf16.msra.mxu0 %v602
    %653 = vmatpush.bf16.msra.mxu0 %v600
    %654 = vmatpush.bf16.msra.mxu0 %v598
    %655 = vmatpush.bf16.msra.mxu0 %v596
    %656 = vmatpush.bf16.msra.mxu0 %v594
    %657 = vmatpush.bf16.msra.mxu0 %v592
    %658 = vmatpush.bf16.msra.mxu0 %v590
    %659 = vmatpush.bf16.msra.mxu0 %v588
    %660 = vmatmul.bf16.gmra.mxu0 %v452
    %v661 = vpop.f32.mrf.mxu0
    %v662 = vadd.f32 %v488, %v661
    %v663 = vpop.f32.mrf.mxu0
    %664 = vdwg.mxu0
    %665 = vmatpush.bf16.msra.mxu0 %v618
    %666 = vmatpush.bf16.msra.mxu0 %v616
    %667 = vmatpush.bf16.msra.mxu0 %v614
    %668 = vmatpush.bf16.msra.mxu0 %v612
    %669 = vmatpush.bf16.msra.mxu0 %v610
    %670 = vmatpush.bf16.msra.mxu0 %v608
    %671 = vmatpush.bf16.msra.mxu0 %v606
    %672 = vmatpush.bf16.msra.mxu0 %v604
    %673 = vmatmul.bf16.gmra.mxu0 %v453
    %v674 = vpop.f32.mrf.mxu0
    %v675 = vadd.f32 %v662, %v674
    %v676 = vpop.f32.mrf.mxu0
    %677 = vdwg.mxu0
    %678 = vmatpush.bf16.msra.mxu0 %v603
    %679 = vmatpush.bf16.msra.mxu0 %v601
    %680 = vmatpush.bf16.msra.mxu0 %v599
    %681 = vmatpush.bf16.msra.mxu0 %v597
    %682 = vmatpush.bf16.msra.mxu0 %v595
    %683 = vmatpush.bf16.msra.mxu0 %v593
    %684 = vmatpush.bf16.msra.mxu0 %v591
    %685 = vmatpush.bf16.msra.mxu0 %v589
    %686 = vmatmul.bf16.gmra.mxu0 %v452
    %v687 = vpop.f32.mrf.mxu0
    %v688 = vadd.f32 %v489, %v687
    %v689 = vpop.f32.mrf.mxu0
    %690 = vdwg.mxu0
    %691 = vmatpush.bf16.msra.mxu0 %v619
    %692 = vmatpush.bf16.msra.mxu0 %v617
    %693 = vmatpush.bf16.msra.mxu0 %v615
    %694 = vmatpush.bf16.msra.mxu0 %v613
    %695 = vmatpush.bf16.msra.mxu0 %v611
    %696 = vmatpush.bf16.msra.mxu0 %v609
    %697 = vmatpush.bf16.msra.mxu0 %v607
    %698 = vmatpush.bf16.msra.mxu0 %v605
    %699 = vmatmul.bf16.gmra.mxu0 %v453
    %v700 = vpop.f32.mrf.mxu0
    %v701 = vadd.f32 %v688, %v700
    %v702 = vpop.f32.mrf.mxu0
    %703 = vdwg.mxu0
    %v706 = vrot.slane %v701, 6
    %vm707 = vcmask 1041408
    %v708 = vsel %vm707, %v675, %v706
    %710 = vst [vmem:[#allocation10] sm:$0xf] %v708
    // Predicated region
    $region42: #{tpu_custom_call.1} parent=1 // pred_check
      _
    $region43: #{tpu_custom_call.1} parent=1 // pred_check_branch
      %712 = sbr.rel (0) target = $region45
    $region44: #{tpu_custom_call.1} parent=1 // pred_region
      %714 = vsyncadd [#allocation4], 0
      %s716 = sshll.u32 [#allocation10], 4
      %s717 = int_to_ptr.vmem [resolvable:$true] %s716
      %s718 = sshll.u32 %s6, 4
      %s719 = int_to_ptr.hbm [resolvable:$true] %s718
      %721 = dma.vmem_to_hbm [thread:$0]  %s717, 64, %s719, [#allocation4]
    $region45: #{tpu_custom_call.1} parent=1 // pred_fallthru
      _
    // Predicated region
    $region46: #{tpu_custom_call.1} parent=1 // pred_check
      _
    $region47: #{tpu_custom_call.1} parent=1 // pred_check_branch
      %723 = sbr.rel (0) target = $region49
    $region48: #{tpu_custom_call.1} parent=1 // pred_region
      %725 = dma.done [#allocation4], 64
    $region49: #{tpu_custom_call.1} parent=1 // pred_fallthru
      _
    %726 = vsyncpa [#allocation3], 1
    %727 = vsyncpa [#allocation6], 1
    %728 = vsyncpa [#allocation9], 1
    %729 = vsyncpa [#allocation4], 1

// kernel: tpu_custom_call.1
$region0: #{tpu_custom_call.1}
  #allocation0 [shape = 'u32[]', space=smem, size = 0x4, offset = 0x4, fixed_abs, tag = 'smem constant byte address 0x4 - core index']
  #allocation1 [shape = 'u32[72,128]{1,0:T(1,128)}', space=vmem, size = 0x9000, scoped, tag = 'internal scratch']
  %s0 = inlined_call_operand.hbm [shape: bf16[32,64], index: 0, kind: input, shape index: {}]
  %s1 = inlined_call_operand.hbm [shape: bf16[64,256], index: 1, kind: input, shape index: {}]
  %s2 = inlined_call_operand.hbm [shape: f32[1,256], index: 2, kind: input, shape index: {}]
  %s3 = inlined_call_operand.vmem [shape: bf16[2,32], index: 3, kind: input, shape index: {}]
  %s4 = inlined_call_operand.hbm [shape: bf16[256,256], index: 4, kind: input, shape index: {}]
  %s5 = inlined_call_operand.vmem [shape: f32[1,256], index: 5, kind: input, shape index: {}]
  %s6 = inlined_call_operand.hbm [shape: f32[2,256], index: 6, kind: output, shape index: {}]
  %s7 = sld [smem:[#allocation0]]
  $region50: #{tpu_custom_call.1} parent=0
    _
  %s9 = ssub.s32 1, %s7
  %s10 = scalar_select 0, %s9, %s7
  $region1: #{tpu_custom_call.1} parent=0
    #allocation2 [shape = 'u8[8192]{0}', space=vmem, size = 0x2000, scoped, tag = 'input window, operand 0, single buffered']
    #allocation3 [shape = 's32[1]{0}', space=sflag, size = 0x4, scoped, tag = 'scoped memory for tpu_custom_call.1']
    #allocation4 [shape = 's32[1]{0}', space=sflag, size = 0x4, scoped, tag = 'scoped memory for tpu_custom_call.1']
    #allocation5 [shape = 'u8[32768]{0}', space=vmem, size = 0x8000, scoped, tag = 'input window, operand 1, single buffered']
    #allocation6 [shape = 's32[1]{0}', space=sflag, size = 0x4, scoped, tag = 'scoped memory for tpu_custom_call.1']
    #allocation7 [shape = 'u8[1024]{0}', space=vmem, size = 0x400, scoped, tag = 'input window, operand 2, single buffered']
    #allocation8 [shape = 'u8[131072]{0}', space=vmem, size = 0x20000, scoped, tag = 'input window, operand 4, single buffered']
    #allocation9 [shape = 's32[1]{0}', space=sflag, size = 0x4, scoped, tag = 'scoped memory for tpu_custom_call.1']
    #allocation10 [shape = 'u8[2048]{0}', space=vmem, size = 0x800, scoped, tag = 'output window, operand 0, single buffered']
    %11 = vsyncpa [#allocation3], 0
    %12 = vsyncpa [#allocation6], 0
    %13 = vsyncpa [#allocation9], 0
    %14 = vsyncpa [#allocation4], 0
    // Predicated region
    $region2: #{tpu_custom_call.1} parent=1 // pred_check
      _
    $region3: #{tpu_custom_call.1} parent=1 // pred_check_branch
      %16 = sbr.rel (0) target = $region5
    $region4: #{tpu_custom_call.1} parent=1 // pred_region
      %18 = vsyncadd [#allocation3], 0
      %s19 = sshll.u32 %s0, 4
      %s20 = int_to_ptr.hbm [resolvable:$true] %s19
      %s21 = sshll.u32 [#allocation2], 4
      %s22 = int_to_ptr.vmem [resolvable:$true] %s21
      %27 = dma.hbm_to_vmem [thread:$0]  %s20, 256, %s22, [#allocation3], 64, 64, 4
    $region5: #{tpu_custom_call.1} parent=1 // pred_fallthru
      _
    // Predicated region
    $region6: #{tpu_custom_call.1} parent=1 // pred_check
      _
    $region7: #{tpu_custom_call.1} parent=1 // pred_check_branch
      %29 = sbr.rel (0) target = $region9
    $region8: #{tpu_custom_call.1} parent=1 // pred_region
      %31 = vsyncadd [#allocation6], 0
      %s32 = sshll.u32 %s1, 4
      %s33 = int_to_ptr.hbm [resolvable:$true] %s32
      %s34 = sshll.u32 [#allocation5], 4
      %s35 = int_to_ptr.vmem [resolvable:$true] %s34
      %40 = dma.hbm_to_vmem [thread:$0]  %s33, 1024, %s35, [#allocation6], 128, 128, 8
    $region9: #{tpu_custom_call.1} parent=1 // pred_fallthru
      _
    // Predicated region
    $region10: #{tpu_custom_call.1} parent=1 // pred_check
      _
    $region11: #{tpu_custom_call.1} parent=1 // pred_check_branch
      %42 = sbr.rel (0) target = $region13
    $region12: #{tpu_custom_call.1} parent=1 // pred_region
      %44 = vsyncadd [#allocation6], 0
      %s46 = sshll.u32 %s2, 4
      %s47 = int_to_ptr.hbm [resolvable:$true] %s46
      %s48 = sshll.u32 [#allocation7], 4
      %s49 = int_to_ptr.vmem [resolvable:$true] %s48
      %51 = dma.hbm_to_vmem [thread:$0]  %s47, 32, %s49, [#allocation6]
    $region13: #{tpu_custom_call.1} parent=1 // pred_fallthru
      _
    // Predicated region
    $region14: #{tpu_custom_call.1} parent=1 // pred_check
      _
    $region15: #{tpu_custom_call.1} parent=1 // pred_check_branch
      %53 = sbr.rel (0) target = $region17
    $region16: #{tpu_custom_call.1} parent=1 // pred_region
      _
    $region17: #{tpu_custom_call.1} parent=1 // pred_fallthru
      _
    // Predicated region
    $region18: #{tpu_custom_call.1} parent=1 // pred_check
      _
    $region19: #{tpu_custom_call.1} parent=1 // pred_check_branch
      %55 = sbr.rel (0) target = $region21
    $region20: #{tpu_custom_call.1} parent=1 // pred_region
      %57 = vsyncadd [#allocation9], 0
      %s58 = sshll.u32 %s4, 4
      %s59 = int_to_ptr.hbm [resolvable:$true] %s58
      %s60 = sshll.u32 [#allocation8], 4
      %s61 = int_to_ptr.vmem [resolvable:$true] %s60
      %66 = dma.hbm_to_vmem [thread:$0]  %s59, 4096, %s61, [#allocation9], 128, 128, 8
    $region21: #{tpu_custom_call.1} parent=1 // pred_fallthru
      _
    // Predicated region
    $region22: #{tpu_custom_call.1} parent=1 // pred_check
      _
    $region23: #{tpu_custom_call.1} parent=1 // pred_check_branch
      %68 = sbr.rel (0) target = $region25
    $region24: #{tpu_custom_call.1} parent=1 // pred_region
      _
    $region25: #{tpu_custom_call.1} parent=1 // pred_fallthru
      _
    // Predicated region
    $region26: #{tpu_custom_call.1} parent=1 // pred_check
      _
    $region27: #{tpu_custom_call.1} parent=1 // pred_check_branch
      %70 = sbr.rel (0) target = $region29
    $region28: #{tpu_custom_call.1} parent=1 // pred_region
      %72 = dma.done [#allocation3], 256
    $region29: #{tpu_custom_call.1} parent=1 // pred_fallthru
      _
    // Predicated region
    $region30: #{tpu_custom_call.1} parent=1 // pred_check
      _
    $region31: #{tpu_custom_call.1} parent=1 // pred_check_branch
      %74 = sbr.rel (0) target = $region33
    $region32: #{tpu_custom_call.1} parent=1 // pred_region
      %76 = dma.done [#allocation6], 1024
    $region33: #{tpu_custom_call.1} parent=1 // pred_fallthru
      _
    // Predicated region
    $region34: #{tpu_custom_call.1} parent=1 // pred_check
      _
    $region35: #{tpu_custom_call.1} parent=1 // pred_check_branch
      %78 = sbr.rel (0) target = $region37
    $region36: #{tpu_custom_call.1} parent=1 // pred_region
      %80 = dma.done [#allocation6], 32
    $region37: #{tpu_custom_call.1} parent=1 // pred_fallthru
      _
    // Predicated region
    $region38: #{tpu_custom_call.1} parent=1 // pred_check
      _
    $region39: #{tpu_custom_call.1} parent=1 // pred_check_branch
      %82 = sbr.rel (0) target = $region41
    $region40: #{tpu_custom_call.1} parent=1 // pred_region
      %84 = dma.done [#allocation9], 4096
    $region41: #{tpu_custom_call.1} parent=1 // pred_fallthru
      _
    %v86 = vld [vmem:[#allocation2] sm:$0xf]
    %v87 = vld [vmem:[#allocation2 + $0x4] sm:$0xf]
    %v88 = vld [vmem:[#allocation2 + $0x8] sm:$0xf]
    %v89 = vld [vmem:[#allocation2 + $0xc] sm:$0xf]
    %v90 = vld [vmem:[#allocation5] sm:$0xff]
    %v91 = vld [vmem:[#allocation5 + $0x8] sm:$0xff]
    %v92 = vld [vmem:[#allocation5 + $0x10] sm:$0xff]
    %v93 = vld [vmem:[#allocation5 + $0x18] sm:$0xff]
    %v94 = vld [vmem:[#allocation5 + $0x20] sm:$0xff]
    %v95 = vld [vmem:[#allocation5 + $0x28] sm:$0xff]
    %v96 = vld [vmem:[#allocation5 + $0x30] sm:$0xff]
    %v97 = vld [vmem:[#allocation5 + $0x38] sm:$0xff]
    %v102 = vunpack.c.l.b16 %v86
    %v103 = vunpack.c.l.b16 %v87
    %v104 = vunpack.c.l.b16 %v88
    %v105 = vunpack.c.l.b16 %v89
    %v106 = vpack.c.b16 %v103, %v102
    %v107 = vpack.c.b16 %v105, %v104
    %v116 = vunpack.c.l.b16 %v90
    %v117 = vunpack.c.h.b16 %v90
    %v118 = vunpack.c.l.b16 %v91
    %v119 = vunpack.c.h.b16 %v91
    %v120 = vunpack.c.l.b16 %v92
    %v121 = vunpack.c.h.b16 %v92
    %v122 = vunpack.c.l.b16 %v93
    %v123 = vunpack.c.h.b16 %v93
    %v124 = vunpack.c.l.b16 %v94
    %v125 = vunpack.c.h.b16 %v94
    %v126 = vunpack.c.l.b16 %v95
    %v127 = vunpack.c.h.b16 %v95
    %v128 = vunpack.c.l.b16 %v96
    %v129 = vunpack.c.h.b16 %v96
    %v130 = vunpack.c.l.b16 %v97
    %v131 = vunpack.c.h.b16 %v97
    %v132 = vpack.c.b16 %v118, %v116
    %v133 = vpack.c.b16 %v119, %v117
    %v134 = vpack.c.b16 %v122, %v120
    %v135 = vpack.c.b16 %v123, %v121
    %v136 = vpack.c.b16 %v126, %v124
    %v137 = vpack.c.b16 %v127, %v125
    %v138 = vpack.c.b16 %v130, %v128
    %v139 = vpack.c.b16 %v131, %v129
    %vm148 = vcmask 523264
    %v150 = vsel %vm148, %v106, 0
    %v153 = vsel %vm148, %v107, 0
    %155 = vmatpush.bf16.msra.mxu0 0
    %156 = vmatpush.bf16.msra.mxu0 0
    %157 = vmatpush.bf16.msra.mxu0 0
    %158 = vmatpush.bf16.msra.mxu0 0
    %159 = vmatpush.bf16.msra.mxu0 %v138
    %160 = vmatpush.bf16.msra.mxu0 %v136
    %161 = vmatpush.bf16.msra.mxu0 %v134
    %162 = vmatpush.bf16.msra.mxu0 %v132
    %163 = vmatmul.bf16.gmra.mxu0 %v150
    %v164 = vpop.f32.mrf.mxu0
    %v165 = vadd.f32 0.0, %v164
    %v166 = vpop.f32.mrf.mxu0
    %v167 = vadd.f32 0.0, %v166
    %168 = vmatmul.bf16.gmra.mxu0 %v153
    %v169 = vpop.f32.mrf.mxu0
    %v170 = vadd.f32 0.0, %v169
    %v171 = vpop.f32.mrf.mxu0
    %v172 = vadd.f32 0.0, %v171
    %173 = vdwg.mxu0
    %174 = vmatpush.bf16.msra.mxu0 0
    %175 = vmatpush.bf16.msra.mxu0 0
    %176 = vmatpush.bf16.msra.mxu0 0
    %177 = vmatpush.bf16.msra.mxu0 0
    %178 = vmatpush.bf16.msra.mxu0 %v139
    %179 = vmatpush.bf16.msra.mxu0 %v137
    %180 = vmatpush.bf16.msra.mxu0 %v135
    %181 = vmatpush.bf16.msra.mxu0 %v133
    %182 = vmatmul.bf16.gmra.mxu0 %v150
    %v183 = vpop.f32.mrf.mxu0
    %v184 = vadd.f32 0.0, %v183
    %v185 = vpop.f32.mrf.mxu0
    %v186 = vadd.f32 0.0, %v185
    %187 = vmatmul.bf16.gmra.mxu0 %v153
    %v188 = vpop.f32.mrf.mxu0
    %v189 = vadd.f32 0.0, %v188
    %v190 = vpop.f32.mrf.mxu0
    %v191 = vadd.f32 0.0, %v190
    %192 = vdwg.mxu0
    %v193 = vpack.c.bf16 %v184, %v165
    %v194 = vpack.c.bf16 %v186, %v167
    %v195 = vpack.c.bf16 %v189, %v170
    %v196 = vpack.c.bf16 %v191, %v172
    %v197 = vld [vmem:[#allocation7] sm:$0x3]
    %v199 = vperm.slane %v197, 0
    %v200 = vperm.slane %v197, 1
    %v203 = vpack.c.bf16 %v200, %v199
    %v205 = vunpack.c.l.b16 %v203
    %v206 = vunpack.c.h.b16 %v203
    %v207 = vpack.c.b16 %v205, %v205
    %v208 = vpack.c.b16 %v206, %v206
    %v210 = vpack.i.b16 %v207, %v207
    %v212 = vperm.slane %v210, 0
    %v214 = vpack.i.b16 %v208, %v208
    %v216 = vperm.slane %v214, 0
    %v217 = vunpack.c.l.bf16 %v193
    %v218 = vunpack.c.h.bf16 %v193
    %v219 = vunpack.c.l.bf16 %v194
    %v220 = vunpack.c.h.bf16 %v194
    %v221 = vunpack.c.l.bf16 %v195
    %v222 = vunpack.c.h.bf16 %v195
    %v223 = vunpack.c.l.bf16 %v196
    %v224 = vunpack.c.h.bf16 %v196
    %v225 = vunpack.c.l.bf16 %v212
    %v226 = vunpack.c.l.bf16 %v216
    %v227 = vadd.f32 %v217, %v225
    %v228 = vadd.f32 %v218, %v226
    %v229 = vadd.f32 %v219, %v225
    %v230 = vadd.f32 %v220, %v226
    %v231 = vadd.f32 %v221, %v225
    %v232 = vadd.f32 %v222, %v226
    %v233 = vadd.f32 %v223, %v225
    %v234 = vadd.f32 %v224, %v226
    %v235 = vpack.c.bf16 %v228, %v227
    %v236 = vpack.c.bf16 %v230, %v229
    %v237 = vpack.c.bf16 %v232, %v231
    %v238 = vpack.c.bf16 %v234, %v233
    %v239 = vunpack.c.l.bf16 %v235
    %v240 = vunpack.c.h.bf16 %v235
    %v241 = vunpack.c.l.bf16 %v236
    %v242 = vunpack.c.h.bf16 %v236
    %v243 = vunpack.c.l.bf16 %v237
    %v244 = vunpack.c.h.bf16 %v237
    %v245 = vunpack.c.l.bf16 %v238
    %v246 = vunpack.c.h.bf16 %v238
    %v247 = vmul.f32 %v239, %v239
    %v248 = vmul.f32 %v240, %v240
    %v249 = vmul.f32 %v241, %v241
    %v250 = vmul.f32 %v242, %v242
    %v251 = vmul.f32 %v243, %v243
    %v252 = vmul.f32 %v244, %v244
    %v253 = vmul.f32 %v245, %v245
    %v254 = vmul.f32 %v246, %v246
    %v255 = vpack.c.bf16 %v248, %v247
    %v256 = vpack.c.bf16 %v250, %v249
    %v257 = vpack.c.bf16 %v252, %v251
    %v258 = vpack.c.bf16 %v254, %v253
    %v259 = vunpack.c.l.bf16 %v255
    %v260 = vunpack.c.h.bf16 %v255
    %v261 = vunpack.c.l.bf16 %v256
    %v262 = vunpack.c.h.bf16 %v256
    %v263 = vunpack.c.l.bf16 %v257
    %v264 = vunpack.c.h.bf16 %v257
    %v265 = vunpack.c.l.bf16 %v258
    %v266 = vunpack.c.h.bf16 %v258
    %v267 = vmul.f32 %v239, %v259
    %v268 = vmul.f32 %v240, %v260
    %v269 = vmul.f32 %v241, %v261
    %v270 = vmul.f32 %v242, %v262
    %v271 = vmul.f32 %v243, %v263
    %v272 = vmul.f32 %v244, %v264
    %v273 = vmul.f32 %v245, %v265
    %v274 = vmul.f32 %v246, %v266
    %v275 = vpack.c.bf16 %v268, %v267
    %v276 = vpack.c.bf16 %v270, %v269
    %v277 = vpack.c.bf16 %v272, %v271
    %v278 = vpack.c.bf16 %v274, %v273
    %v279 = vunpack.c.l.bf16 %v275
    %v280 = vunpack.c.h.bf16 %v275
    %v281 = vunpack.c.l.bf16 %v276
    %v282 = vunpack.c.h.bf16 %v276
    %v283 = vunpack.c.l.bf16 %v277
    %v284 = vunpack.c.h.bf16 %v277
    %v285 = vunpack.c.l.bf16 %v278
    %v286 = vunpack.c.h.bf16 %v278
    %v287 = vmul.f32 %v279, 0.044677734
    %v288 = vmul.f32 %v280, 0.044677734
    %v289 = vmul.f32 %v281, 0.044677734
    %v290 = vmul.f32 %v282, 0.044677734
    %v291 = vmul.f32 %v283, 0.044677734
    %v292 = vmul.f32 %v284, 0.044677734
    %v293 = vmul.f32 %v285, 0.044677734
    %v294 = vmul.f32 %v286, 0.044677734
    %v295 = vpack.c.bf16 %v288, %v287
    %v296 = vpack.c.bf16 %v290, %v289
    %v297 = vpack.c.bf16 %v292, %v291
    %v298 = vpack.c.bf16 %v294, %v293
    %v299 = vunpack.c.l.bf16 %v295
    %v300 = vunpack.c.h.bf16 %v295
    %v301 = vunpack.c.l.bf16 %v296
    %v302 = vunpack.c.h.bf16 %v296
    %v303 = vunpack.c.l.bf16 %v297
    %v304 = vunpack.c.h.bf16 %v297
    %v305 = vunpack.c.l.bf16 %v298
    %v306 = vunpack.c.h.bf16 %v298
    %v307 = vadd.f32 %v239, %v299
    %v308 = vadd.f32 %v240, %v300
    %v309 = vadd.f32 %v241, %v301
    %v310 = vadd.f32 %v242, %v302
    %v311 = vadd.f32 %v243, %v303
    %v312 = vadd.f32 %v244, %v304
    %v313 = vadd.f32 %v245, %v305
    %v314 = vadd.f32 %v246, %v306
    %v315 = vpack.c.bf16 %v308, %v307
    %v316 = vpack.c.bf16 %v310, %v309
    %v317 = vpack.c.bf16 %v312, %v311
    %v318 = vpack.c.bf16 %v314, %v313
    %v319 = vunpack.c.l.bf16 %v315
    %v320 = vunpack.c.h.bf16 %v315
    %v321 = vunpack.c.l.bf16 %v316
    %v322 = vunpack.c.h.bf16 %v316
    %v323 = vunpack.c.l.bf16 %v317
    %v324 = vunpack.c.h.bf16 %v317
    %v325 = vunpack.c.l.bf16 %v318
    %v326 = vunpack.c.h.bf16 %v318
    %v327 = vmul.f32 %v319, 0.796875
    %v328 = vmul.f32 %v320, 0.796875
    %v329 = vmul.f32 %v321, 0.796875
    %v330 = vmul.f32 %v322, 0.796875
    %v331 = vmul.f32 %v323, 0.796875
    %v332 = vmul.f32 %v324, 0.796875
    %v333 = vmul.f32 %v325, 0.796875
    %v334 = vmul.f32 %v326, 0.796875
    %v335 = vpack.c.bf16 %v328, %v327
    %v336 = vpack.c.bf16 %v330, %v329
    %v337 = vpack.c.bf16 %v332, %v331
    %v338 = vpack.c.bf16 %v334, %v333
    %v339 = vunpack.c.l.bf16 %v335
    %v340 = vunpack.c.h.bf16 %v335
    %v341 = vunpack.c.l.bf16 %v336
    %v342 = vunpack.c.h.bf16 %v336
    %v343 = vunpack.c.l.bf16 %v337
    %v344 = vunpack.c.h.bf16 %v337
    %v345 = vunpack.c.l.bf16 %v338
    %v346 = vunpack.c.h.bf16 %v338
    %v347 = vtanh.pop %v339
    %v348 = vtanh.pop %v340
    %v349 = vtanh.pop %v341
    %v350 = vtanh.pop %v342
    %v351 = vtanh.pop %v343
    %v352 = vtanh.pop %v344
    %v353 = vtanh.pop %v345
    %v354 = vtanh.pop %v346
    %v355 = vpack.c.bf16 %v348, %v347
    %v356 = vpack.c.bf16 %v350, %v349
    %v357 = vpack.c.bf16 %v352, %v351
    %v358 = vpack.c.bf16 %v354, %v353
    %v359 = vunpack.c.l.bf16 %v355
    %v360 = vunpack.c.h.bf16 %v355
    %v361 = vunpack.c.l.bf16 %v356
    %v362 = vunpack.c.h.bf16 %v356
    %v363 = vunpack.c.l.bf16 %v357
    %v364 = vunpack.c.h.bf16 %v357
    %v365 = vunpack.c.l.bf16 %v358
    %v366 = vunpack.c.h.bf16 %v358
    %v367 = vadd.f32 %v359, 1.0
    %v368 = vadd.f32 %v360, 1.0
    %v369 = vadd.f32 %v361, 1.0
    %v370 = vadd.f32 %v362, 1.0
    %v371 = vadd.f32 %v363, 1.0
    %v372 = vadd.f32 %v364, 1.0
    %v373 = vadd.f32 %v365, 1.0
    %v374 = vadd.f32 %v366, 1.0
    %v375 = vpack.c.bf16 %v368, %v367
    %v376 = vpack.c.bf16 %v370, %v369
    %v377 = vpack.c.bf16 %v372, %v371
    %v378 = vpack.c.bf16 %v374, %v373
    %v379 = vunpack.c.l.bf16 %v375
    %v380 = vunpack.c.h.bf16 %v375
    %v381 = vunpack.c.l.bf16 %v376
    %v382 = vunpack.c.h.bf16 %v376
    %v383 = vunpack.c.l.bf16 %v377
    %v384 = vunpack.c.h.bf16 %v377
    %v385 = vunpack.c.l.bf16 %v378
    %v386 = vunpack.c.h.bf16 %v378
    %v387 = vmul.f32 %v379, 0.5
    %v388 = vmul.f32 %v380, 0.5
    %v389 = vmul.f32 %v381, 0.5
    %v390 = vmul.f32 %v382, 0.5
    %v391 = vmul.f32 %v383, 0.5
    %v392 = vmul.f32 %v384, 0.5
    %v393 = vmul.f32 %v385, 0.5
    %v394 = vmul.f32 %v386, 0.5
    %v395 = vpack.c.bf16 %v388, %v387
    %v396 = vpack.c.bf16 %v390, %v389
    %v397 = vpack.c.bf16 %v392, %v391
    %v398 = vpack.c.bf16 %v394, %v393
    %v399 = vunpack.c.l.bf16 %v395
    %v400 = vunpack.c.h.bf16 %v395
    %v401 = vunpack.c.l.bf16 %v396
    %v402 = vunpack.c.h.bf16 %v396
    %v403 = vunpack.c.l.bf16 %v397
    %v404 = vunpack.c.h.bf16 %v397
    %v405 = vunpack.c.l.bf16 %v398
    %v406 = vunpack.c.h.bf16 %v398
    %v407 = vmul.f32 %v239, %v399
    %v408 = vmul.f32 %v240, %v400
    %v409 = vmul.f32 %v241, %v401
    %v410 = vmul.f32 %v242, %v402
    %v411 = vmul.f32 %v243, %v403
    %v412 = vmul.f32 %v244, %v404
    %v413 = vmul.f32 %v245, %v405
    %v414 = vmul.f32 %v246, %v406
    %v415 = vpack.c.bf16 %v409, %v407
    %v416 = vpack.c.bf16 %v410, %v408
    %v417 = vpack.c.bf16 %v413, %v411
    %v418 = vpack.c.bf16 %v414, %v412
    %v419 = vld [vmem:[%s3] sm:$0x1]
    %vm420 = vcmask 261120
    %v422 = vsel %vm420, %v419, 0
    %424 = vmatpush.bf16.msra.mxu0 0
    %425 = vmatpush.bf16.msra.mxu0 0
    %426 = vmatpush.bf16.msra.mxu0 0
    %427 = vmatpush.bf16.msra.mxu0 0
    %428 = vmatpush.bf16.msra.mxu0 0
    %429 = vmatpush.bf16.msra.mxu0 0
    %430 = vmatpush.bf16.msra.mxu0 %v417
    %431 = vmatpush.bf16.msra.mxu0 %v415
    %432 = vmatmul.bf16.gmra.mxu0 %v422
    %v433 = vpop.f32.mrf.mxu0
    %v434 = vadd.f32 0.0, %v433
    %v435 = vpop.f32.mrf.mxu0
    %436 = vdwg.mxu0
    %437 = vmatpush.bf16.msra.mxu0 0
    %438 = vmatpush.bf16.msra.mxu0 0
    %439 = vmatpush.bf16.msra.mxu0 0
    %440 = vmatpush.bf16.msra.mxu0 0
    %441 = vmatpush.bf16.msra.mxu0 0
    %442 = vmatpush.bf16.msra.mxu0 0
    %443 = vmatpush.bf16.msra.mxu0 %v418
    %444 = vmatpush.bf16.msra.mxu0 %v416
    %445 = vmatmul.bf16.gmra.mxu0 %v422
    %v446 = vpop.f32.mrf.mxu0
    %v447 = vadd.f32 0.0, %v446
    %v448 = vpop.f32.mrf.mxu0
    %449 = vdwg.mxu0
    %v450 = vmul.f32 %v434, 0.0625
    %v451 = vmul.f32 %v447, 0.0625
    %v452 = vpack.c.bf16 %v450, %v450
    %v453 = vpack.c.bf16 %v451, %v451
    %v454 = vld [vmem:[#allocation8] sm:$0xff]
    %v455 = vld [vmem:[#allocation8 + $0x8] sm:$0xff]
    %v456 = vld [vmem:[#allocation8 + $0x10] sm:$0xff]
    %v457 = vld [vmem:[#allocation8 + $0x18] sm:$0xff]
    %v458 = vld [vmem:[#allocation8 + $0x20] sm:$0xff]
    %v459 = vld [vmem:[#allocation8 + $0x28] sm:$0xff]
    %v460 = vld [vmem:[#allocation8 + $0x30] sm:$0xff]
    %v461 = vld [vmem:[#allocation8 + $0x38] sm:$0xff]
    %v462 = vld [vmem:[#allocation8 + $0x40] sm:$0xff]
    %v463 = vld [vmem:[#allocation8 + $0x48] sm:$0xff]
    %v464 = vld [vmem:[#allocation8 + $0x50] sm:$0xff]
    %v465 = vld [vmem:[#allocation8 + $0x58] sm:$0xff]
    %v466 = vld [vmem:[#allocation8 + $0x60] sm:$0xff]
    %v467 = vld [vmem:[#allocation8 + $0x68] sm:$0xff]
    %v468 = vld [vmem:[#allocation8 + $0x70] sm:$0xff]
    %v469 = vld [vmem:[#allocation8 + $0x78] sm:$0xff]
    %v470 = vld [vmem:[#allocation8 + $0x80] sm:$0xff]
    %v471 = vld [vmem:[#allocation8 + $0x88] sm:$0xff]
    %v472 = vld [vmem:[#allocation8 + $0x90] sm:$0xff]
    %v473 = vld [vmem:[#allocation8 + $0x98] sm:$0xff]
    %v474 = vld [vmem:[#allocation8 + $0xa0] sm:$0xff]
    %v475 = vld [vmem:[#allocation8 + $0xa8] sm:$0xff]
    %v476 = vld [vmem:[#allocation8 + $0xb0] sm:$0xff]
    %v477 = vld [vmem:[#allocation8 + $0xb8] sm:$0xff]
    %v478 = vld [vmem:[#allocation8 + $0xc0] sm:$0xff]
    %v479 = vld [vmem:[#allocation8 + $0xc8] sm:$0xff]
    %v480 = vld [vmem:[#allocation8 + $0xd0] sm:$0xff]
    %v481 = vld [vmem:[#allocation8 + $0xd8] sm:$0xff]
    %v482 = vld [vmem:[#allocation8 + $0xe0] sm:$0xff]
    %v483 = vld [vmem:[#allocation8 + $0xe8] sm:$0xff]
    %v484 = vld [vmem:[#allocation8 + $0xf0] sm:$0xff]
    %v485 = vld [vmem:[#allocation8 + $0xf8] sm:$0xff]
    %v486 = vld [vmem:[%s5] sm:$0x3]
    %v488 = vperm.slane %v486, 0
    %v489 = vperm.slane %v486, 1
    %v524 = vunpack.c.l.b16 %v454
    %v525 = vunpack.c.h.b16 %v454
    %v526 = vunpack.c.l.b16 %v455
    %v527 = vunpack.c.h.b16 %v455
    %v528 = vunpack.c.l.b16 %v456
    %v529 = vunpack.c.h.b16 %v456
    %v530 = vunpack.c.l.b16 %v457
    %v531 = vunpack.c.h.b16 %v457
    %v532 = vunpack.c.l.b16 %v458
    %v533 = vunpack.c.h.b16 %v458
    %v534 = vunpack.c.l.b16 %v459
    %v535 = vunpack.c.h.b16 %v459
    %v536 = vunpack.c.l.b16 %v460
    %v537 = vunpack.c.h.b16 %v460
    %v538 = vunpack.c.l.b16 %v461
    %v539 = vunpack.c.h.b16 %v461
    %v540 = vunpack.c.l.b16 %v462
    %v541 = vunpack.c.h.b16 %v462
    %v542 = vunpack.c.l.b16 %v463
    %v543 = vunpack.c.h.b16 %v463
    %v544 = vunpack.c.l.b16 %v464
    %v545 = vunpack.c.h.b16 %v464
    %v546 = vunpack.c.l.b16 %v465
    %v547 = vunpack.c.h.b16 %v465
    %v548 = vunpack.c.l.b16 %v466
    %v549 = vunpack.c.h.b16 %v466
    %v550 = vunpack.c.l.b16 %v467
    %v551 = vunpack.c.h.b16 %v467
    %v552 = vunpack.c.l.b16 %v468
    %v553 = vunpack.c.h.b16 %v468
    %v554 = vunpack.c.l.b16 %v469
    %v555 = vunpack.c.h.b16 %v469
    %v556 = vunpack.c.l.b16 %v470
    %v557 = vunpack.c.h.b16 %v470
    %v558 = vunpack.c.l.b16 %v471
    %v559 = vunpack.c.h.b16 %v471
    %v560 = vunpack.c.l.b16 %v472
    %v561 = vunpack.c.h.b16 %v472
    %v562 = vunpack.c.l.b16 %v473
    %v563 = vunpack.c.h.b16 %v473
    %v564 = vunpack.c.l.b16 %v474
    %v565 = vunpack.c.h.b16 %v474
    %v566 = vunpack.c.l.b16 %v475
    %v567 = vunpack.c.h.b16 %v475
    %v568 = vunpack.c.l.b16 %v476
    %v569 = vunpack.c.h.b16 %v476
    %v570 = vunpack.c.l.b16 %v477
    %v571 = vunpack.c.h.b16 %v477
    %v572 = vunpack.c.l.b16 %v478
    %v573 = vunpack.c.h.b16 %v478
    %v574 = vunpack.c.l.b16 %v479
    %v575 = vunpack.c.h.b16 %v479
    %v576 = vunpack.c.l.b16 %v480
    %v577 = vunpack.c.h.b16 %v480
    %v578 = vunpack.c.l.b16 %v481
    %v579 = vunpack.c.h.b16 %v481
    %v580 = vunpack.c.l.b16 %v482
    %v581 = vunpack.c.h.b16 %v482
    %v582 = vunpack.c.l.b16 %v483
    %v583 = vunpack.c.h.b16 %v483
    %v584 = vunpack.c.l.b16 %v484
    %v585 = vunpack.c.h.b16 %v484
    %v586 = vunpack.c.l.b16 %v485
    %v587 = vunpack.c.h.b16 %v485
    %v588 = vpack.c.b16 %v526, %v524
    %v589 = vpack.c.b16 %v527, %v525
    %v590 = vpack.c.b16 %v530, %v528
    %v591 = vpack.c.b16 %v531, %v529
    %v592 = vpack.c.b16 %v534, %v532
    %v593 = vpack.c.b16 %v535, %v533
    %v594 = vpack.c.b16 %v538, %v536
    %v595 = vpack.c.b16 %v539, %v537
    %v596 = vpack.c.b16 %v542, %v540
    %v597 = vpack.c.b16 %v543, %v541
    %v598 = vpack.c.b16 %v546, %v544
    %v599 = vpack.c.b16 %v547, %v545
    %v600 = vpack.c.b16 %v550, %v548
    %v601 = vpack.c.b16 %v551, %v549
    %v602 = vpack.c.b16 %v554, %v552
    %v603 = vpack.c.b16 %v555, %v553
    %v604 = vpack.c.b16 %v558, %v556
    %v605 = vpack.c.b16 %v559, %v557
    %v606 = vpack.c.b16 %v562, %v560
    %v607 = vpack.c.b16 %v563, %v561
    %v608 = vpack.c.b16 %v566, %v564
    %v609 = vpack.c.b16 %v567, %v565
    %v610 = vpack.c.b16 %v570, %v568
    %v611 = vpack.c.b16 %v571, %v569
    %v612 = vpack.c.b16 %v574, %v572
    %v613 = vpack.c.b16 %v575, %v573
    %v614 = vpack.c.b16 %v578, %v576
    %v615 = vpack.c.b16 %v579, %v577
    %v616 = vpack.c.b16 %v582, %v580
    %v617 = vpack.c.b16 %v583, %v581
    %v618 = vpack.c.b16 %v586, %v584
    %v619 = vpack.c.b16 %v587, %v585
    %652 = vmatpush.bf16.msra.mxu0 %v602
    %653 = vmatpush.bf16.msra.mxu0 %v600
    %654 = vmatpush.bf16.msra.mxu0 %v598
    %655 = vmatpush.bf16.msra.mxu0 %v596
    %656 = vmatpush.bf16.msra.mxu0 %v594
    %657 = vmatpush.bf16.msra.mxu0 %v592
    %658 = vmatpush.bf16.msra.mxu0 %v590
    %659 = vmatpush.bf16.msra.mxu0 %v588
    %660 = vmatmul.bf16.gmra.mxu0 %v452
    %v661 = vpop.f32.mrf.mxu0
    %v662 = vadd.f32 %v488, %v661
    %v663 = vpop.f32.mrf.mxu0
    %664 = vdwg.mxu0
    %665 = vmatpush.bf16.msra.mxu0 %v618
    %666 = vmatpush.bf16.msra.mxu0 %v616
    %667 = vmatpush.bf16.msra.mxu0 %v614
    %668 = vmatpush.bf16.msra.mxu0 %v612
    %669 = vmatpush.bf16.msra.mxu0 %v610
    %670 = vmatpush.bf16.msra.mxu0 %v608
    %671 = vmatpush.bf16.msra.mxu0 %v606
    %672 = vmatpush.bf16.msra.mxu0 %v604
    %673 = vmatmul.bf16.gmra.mxu0 %v453
    %v674 = vpop.f32.mrf.mxu0
    %v675 = vadd.f32 %v662, %v674
    %v676 = vpop.f32.mrf.mxu0
    %677 = vdwg.mxu0
    %678 = vmatpush.bf16.msra.mxu0 %v603
    %679 = vmatpush.bf16.msra.mxu0 %v601
    %680 = vmatpush.bf16.msra.mxu0 %v599
    %681 = vmatpush.bf16.msra.mxu0 %v597
    %682 = vmatpush.bf16.msra.mxu0 %v595
    %683 = vmatpush.bf16.msra.mxu0 %v593
    %684 = vmatpush.bf16.msra.mxu0 %v591
    %685 = vmatpush.bf16.msra.mxu0 %v589
    %686 = vmatmul.bf16.gmra.mxu0 %v452
    %v687 = vpop.f32.mrf.mxu0
    %v688 = vadd.f32 %v489, %v687
    %v689 = vpop.f32.mrf.mxu0
    %690 = vdwg.mxu0
    %691 = vmatpush.bf16.msra.mxu0 %v619
    %692 = vmatpush.bf16.msra.mxu0 %v617
    %693 = vmatpush.bf16.msra.mxu0 %v615
    %694 = vmatpush.bf16.msra.mxu0 %v613
    %695 = vmatpush.bf16.msra.mxu0 %v611
    %696 = vmatpush.bf16.msra.mxu0 %v609
    %697 = vmatpush.bf16.msra.mxu0 %v607
    %698 = vmatpush.bf16.msra.mxu0 %v605
    %699 = vmatmul.bf16.gmra.mxu0 %v453
    %v700 = vpop.f32.mrf.mxu0
    %v701 = vadd.f32 %v688, %v700
    %v702 = vpop.f32.mrf.mxu0
    %703 = vdwg.mxu0
    %v706 = vrot.slane %v701, 6
    %vm707 = vcmask 1041408
    %v708 = vsel %vm707, %v675, %v706
    %710 = vst [vmem:[#allocation10] sm:$0xf] %v708
    // Predicated region
    $region42: #{tpu_custom_call.1} parent=1 // pred_check
      _
    $region43: #{tpu_custom_call.1} parent=1 // pred_check_branch
      %712 = sbr.rel (0) target = $region45
    $region44: #{tpu_custom_call.1} parent=1 // pred_region
      %714 = vsyncadd [#allocation4], 0
      %s716 = sshll.u32 [#allocation10], 4
      %s717 = int_to_ptr.vmem [resolvable:$true] %s716
      %s718 = sshll.u32 %s6, 4
      %s719 = int_to_ptr.hbm [resolvable:$true] %s718
      %721 = dma.vmem_to_hbm [thread:$0]  %s717, 64, %s719, [#allocation4]
    $region45: #{tpu_custom_call.1} parent=1 // pred_fallthru
      _
    // Predicated region
    $region46: #{tpu_custom_call.1} parent=1 // pred_check
      _
    $region47: #{tpu_custom_call.1} parent=1 // pred_check_branch
      %723 = sbr.rel (0) target = $region49
    $region48: #{tpu_custom_call.1} parent=1 // pred_region
      %725 = dma.done [#allocation4], 64
    $region49: #{tpu_custom_call.1} parent=1 // pred_fallthru
      _
    %726 = vsyncpa [#allocation3], 1
    %727 = vsyncpa [#allocation6], 1
    %728 = vsyncpa [#allocation9], 1
    %729 = vsyncpa [#allocation4], 1

</llo_original>
